<compile_context>
chip_gen: v5e
topology: v5e:2x2
jax: 0.10.0
libtpu: 0.0.40
codegen_flags: <defaults>
</compile_context>

<pallas_src>
import jax
import jax.numpy as jnp
from jax.experimental import pallas as pl
from jax.experimental.pallas import tpu as pltpu

HIDDEN = 768        # BERT hidden size feeding the classifier head
NUM_CLASSES = 2     # CoLA: acceptable / unacceptable
PAD_C = 128         # lane-dense padded classifier width (sliced back to 2)
TB = 8              # batch tile  (sublane-dense accumulator / output)
TS = 128            # sequence chunk per grid step (lane-aligned)


def cola_head_kernel(tok_ref, invc_ref, table_ref, w_ref, b_ref,
                     out_ref, acc_ref):
    """Fused one-hot gather + masked mean pool + Linear(768, 2).

    grid = (B//TB, S//TS); axis 1 (sequence chunks) is the reduction axis.

    tok_ref  : [TB, TS]  int32    token ids; padded positions hold sentinel == V
    invc_ref : [TB, 1]   float32  1 / max(valid_count, 1) per batch row
    table_ref: [V, H]    bfloat16 embedding table (VMEM-resident, loaded once)
    w_ref    : [H, 128]  float32  zero-padded classifier weight (resident)
    b_ref    : [1, 128]  float32  zero-padded classifier bias   (resident)
    out_ref  : [TB, 128] float32  padded logits for this batch tile
    acc_ref  : [TB, H]   float32  pooled-sum accumulator (persists over chunks)
    """
    si = pl.program_id(1)
    tb, ts = tok_ref.shape
    v = table_ref.shape[0]

    @pl.when(si == 0)
    def _init():
        acc_ref[...] = jnp.zeros_like(acc_ref)

    # Masked one-hot histogram over the vocab: hist[b, c] = #{t : tok[b,t]==c}.
    # Sentinel ids (== V) match no column, so padded tokens vanish for free.
    ids = tok_ref[...]                                              # (TB, TS)
    iota_v = jax.lax.broadcasted_iota(jnp.int32, (tb, v, ts), 1)    # vocab ids
    onehot = (ids[:, None, :] == iota_v).astype(jnp.float32)        # (TB,V,TS)
    hist = jnp.sum(onehot, axis=2)                                  # (TB, V)

    # Gather-as-matmul on the MXU: (TB, V) @ (V, H) -> (TB, H), f32 accumulate.
    # Counts <= TS are exactly representable in bf16.
    acc_ref[...] += jnp.dot(hist.astype(table_ref.dtype), table_ref[...],
                            preferred_element_type=jnp.float32)

    @pl.when(si == pl.num_programs(1) - 1)
    def _finalize():
        # TODO(synk): nn.Dropout() is identity at inference; training-mode
        # dropout (p=0.5 via pltpu.prng_random_bits) intentionally omitted.
        pooled = acc_ref[...] * invc_ref[...]                       # (TB, H)
        logits = jnp.dot(pooled, w_ref[...],
                         preferred_element_type=jnp.float32)        # (TB, 128)
        out_ref[...] = (logits + b_ref[...]).astype(out_ref.dtype)


@jax.jit
def cola_forward(tokens, mask, type_id, params):
    """Forward mirroring Model.forward(tokens, mask, type_id).

    The pretrained BERT backbone is untranslatable (external checkpoint); a
    deterministic embedding lookup + masked mean pooling stands in for the
    pooled output.  Gather, pooling and the 768->2 head run in one kernel.
    """
    del type_id  # consumed only by the (untranslatable) BERT backbone

    B, S = tokens.shape
    table = params["emb_table"]                       # [V, H] bfloat16
    V, H = table.shape
    w_pad = params["fc_w_pad"]                        # [H, 128] f32 (padded @ init)
    b_pad = params["fc_b_pad"]                        # [1, 128] f32 (padded @ init)

    # Fold the attention mask into the ids: padded positions -> sentinel V
    # (matches no one-hot column inside the kernel).
    tok_eff = jnp.where(mask != 0, tokens, V).astype(jnp.int32)     # [B, S]
    inv_cnt = 1.0 / jnp.maximum(
        jnp.sum(mask, axis=1, keepdims=True).astype(jnp.float32), 1.0)  # [B, 1]

    # Tile sizes obey the (8, 128) block rule: 8/128-aligned or full-dim.
    tb = TB if B % TB == 0 else B
    ts = TS if S % TS == 0 else S
    grid = (B // tb, S // ts)          # reduction (sequence) axis last

    grid_spec = pltpu.PrefetchScalarGridSpec(
        num_scalar_prefetch=0,
        grid=grid,
        in_specs=[
            pl.BlockSpec((tb, ts), lambda bi, si: (bi, si)),     # token chunk
            pl.BlockSpec((tb, 1), lambda bi, si: (bi, 0)),       # 1/valid-count
            pl.BlockSpec((V, H), lambda bi, si: (0, 0)),         # resident table
            pl.BlockSpec((H, PAD_C), lambda bi, si: (0, 0)),     # classifier W
            pl.BlockSpec((1, PAD_C), lambda bi, si: (0, 0)),     # classifier b
        ],
        out_specs=pl.BlockSpec((tb, PAD_C), lambda bi, si: (bi, 0)),
        scratch_shapes=[pltpu.VMEM((tb, H), jnp.float32)],
    )

    out = pl.pallas_call(
        cola_head_kernel,
        out_shape=jax.ShapeDtypeStruct((B, PAD_C), jnp.float32),
        grid_spec=grid_spec,
        compiler_params=pltpu.CompilerParams(
            # batch-tile axis shards across v7x's two TensorCores; the
            # sequence-chunk axis is the sequential accumulation axis.
            dimension_semantics=("parallel", "arbitrary")),
    )(tok_eff, inv_cnt, table, w_pad, b_pad)

    return out[:, :NUM_CLASSES]


def init_params(key, vocab_size=128, hidden=HIDDEN, num_classes=NUM_CLASSES):
    k_emb, k_w = jax.random.split(key)
    fc_w = 0.02 * jax.random.normal(k_w, (hidden, num_classes), jnp.float32)
    fc_b = jnp.zeros((num_classes,), jnp.float32)
    # Classifier padding hoisted out of the forward path (built once here).
    fc_w_pad = jnp.zeros((hidden, PAD_C), jnp.float32).at[:, :num_classes].set(fc_w)
    fc_b_pad = jnp.zeros((1, PAD_C), jnp.float32).at[0, :num_classes].set(fc_b)
    return {
        # embedding table streamed/held in bf16 (half the HBM/VMEM bytes)
        "emb_table": (0.02 * jax.random.normal(
            k_emb, (vocab_size, hidden), jnp.float32)).astype(jnp.bfloat16),
        "fc_w_pad": fc_w_pad,
        "fc_b_pad": fc_b_pad,
    }


if __name__ == "__main__":
    key = jax.random.PRNGKey(0)
    k_params, k_tok, k_len = jax.random.split(key, 3)

    B, S, VOCAB = 16, 256, 128          # 2 batch tiles x 2 sequence chunks
    params = init_params(k_params, vocab_size=VOCAB)

    tokens = jax.random.randint(k_tok, (B, S), 0, VOCAB, dtype=jnp.int32)
    # variable-length sequences: row i valid for lengths[i] tokens
    lengths = jax.random.randint(k_len, (B,), 1, S + 1, dtype=jnp.int32)
    mask = (jnp.arange(S)[None, :] < lengths[:, None]).astype(jnp.int32)
    type_id = jnp.zeros((B, S), dtype=jnp.int32)

    logits = cola_forward(tokens, mask, type_id, params)
    jax.block_until_ready(logits)

    # pure-JAX reference (same bf16 table values, f32 math)
    emb_ref = jnp.take(params["emb_table"], tokens, axis=0).astype(jnp.float32)
    m = mask.astype(jnp.float32)
    pooled_ref = (emb_ref * m[:, :, None]).sum(axis=1) / jnp.maximum(
        m.sum(axis=1, keepdims=True), 1.0)
    w_ref = params["fc_w_pad"][:, :NUM_CLASSES]
    b_ref = params["fc_b_pad"][0, :NUM_CLASSES]
    ref = pooled_ref @ w_ref + b_ref[None, :]

    assert logits.shape == (B, NUM_CLASSES)
    assert bool(jnp.all(jnp.isfinite(logits)))
    assert jnp.allclose(logits, ref, atol=2e-4, rtol=2e-3), float(
        jnp.max(jnp.abs(logits - ref)))

    print("KERNEL_OK")
</pallas_src>

<mosaic_0001>
module attributes {stable_mosaic.version = 11 : i64} {
  func.func @cola_head_kernel(%arg0: i32, %arg1: i32, %arg2: memref<8x128xi32, #tpu.memory_space<vmem>>, %arg3: memref<8x1xf32, #tpu.memory_space<vmem>>, %arg4: memref<128x768xbf16, #tpu.memory_space<vmem>>, %arg5: memref<768x128xf32, #tpu.memory_space<vmem>>, %arg6: memref<1x128xf32, #tpu.memory_space<vmem>>, %arg7: memref<8x128xf32, #tpu.memory_space<vmem>>, %arg8: memref<8x768xf32, #tpu.memory_space<vmem>>) attributes {dimension_semantics = [#tpu.dimension_semantics<parallel>, #tpu.dimension_semantics<arbitrary>], iteration_bounds = array<i64: 2, 2>, scalar_prefetch = 0 : i64, scratch_operands = 1 : i64, tpu.core_type = #tpu.core_type<tc>, window_params = [{transform_indices = @transform_0, window_bounds = array<i64: 8, 128>}, {transform_indices = @transform_1, window_bounds = array<i64: 8, 1>}, {pipeline_mode = #tpu.pipeline_mode<synchronous>, transform_indices = @transform_2, window_bounds = array<i64: 128, 768>}, {pipeline_mode = #tpu.pipeline_mode<synchronous>, transform_indices = @transform_3, window_bounds = array<i64: 768, 128>}, {pipeline_mode = #tpu.pipeline_mode<synchronous>, transform_indices = @transform_4, window_bounds = array<i64: 1, 128>}, {transform_indices = @transform_5, window_bounds = array<i64: 8, 128>}]} {
    %c0_i32 = arith.constant 0 : i32
    %0 = arith.cmpi eq, %arg1, %c0_i32 : i32
    %1 = arith.extui %0 : i1 to i32
    %c0_i32_0 = arith.constant 0 : i32
    %2 = arith.cmpi ne, %1, %c0_i32_0 : i32
    scf.if %2 {
      %cst_10 = arith.constant 0.000000e+00 : f32
      %20 = vector.broadcast %cst_10 : f32 to vector<8x768xf32>
      %c0_11 = arith.constant 0 : index
      %c0_12 = arith.constant 0 : index
      %21 = vector.load %arg8[%c0_11, %c0_12] : memref<8x768xf32, #tpu.memory_space<vmem>>, vector<8x768xf32>
      tpu.vector_store %arg8[%c0_11, %c0_12], %20 {strides = array<i32>} : memref<8x768xf32, #tpu.memory_space<vmem>>, vector<8x768xf32>,
    } else {
    }
    %c0 = arith.constant 0 : index
    %c0_1 = arith.constant 0 : index
    %3 = vector.load %arg2[%c0, %c0_1] : memref<8x128xi32, #tpu.memory_space<vmem>>, vector<8x128xi32>
    %4 = tpu.iota {dimensions = array<i32: 1>} : vector<8x128x128xi32>
    %5 = vector.shape_cast %3 : vector<8x128xi32> to vector<8x1x128xi32>
    %6 = vector.broadcast %5 : vector<8x1x128xi32> to vector<8x128x128xi32>
    %7 = arith.cmpi eq, %6, %4 : vector<8x128x128xi32>
    %8 = arith.extui %7 : vector<8x128x128xi1> to vector<8x128x128xi32>
    %9 = arith.sitofp %8 : vector<8x128x128xi32> to vector<8x128x128xf32>
    %cst = arith.constant dense<0.000000e+00> : vector<8x128xf32>
    %10 = vector.multi_reduction <add>, %9, %cst [2] : vector<8x128x128xf32> to vector<8x128xf32>
    %c0_2 = arith.constant 0 : index
    %c0_3 = arith.constant 0 : index
    %11 = vector.load %arg8[%c0_2, %c0_3] : memref<8x768xf32, #tpu.memory_space<vmem>>, vector<8x768xf32>
    %12 = arith.truncf %10 : vector<8x128xf32> to vector<8x128xbf16>
    %c0_4 = arith.constant 0 : index
    %c0_5 = arith.constant 0 : index
    %13 = vector.load %arg4[%c0_4, %c0_5] : memref<128x768xbf16, #tpu.memory_space<vmem>>, vector<128x768xbf16>
    %cst_6 = arith.constant dense<0.000000e+00> : vector<8x768xf32>
    %14 = tpu.matmul %12, %13, %cst_6 {dimension_numbers = #tpu.dot_dimension_numbers<[1], [0], [0], [1], [0, 0, 1, 1], [], []>} : vector<8x128xbf16>, vector<128x768xbf16>, vector<8x768xf32> -> vector<8x768xf32>
    %15 = arith.addf %11, %14 : vector<8x768xf32>
    %c0_7 = arith.constant 0 : index
    %c0_8 = arith.constant 0 : index
    %16 = vector.load %arg8[%c0_7, %c0_8] : memref<8x768xf32, #tpu.memory_space<vmem>>, vector<8x768xf32>
    tpu.vector_store %arg8[%c0_7, %c0_8], %15 {strides = array<i32>} : memref<8x768xf32, #tpu.memory_space<vmem>>, vector<8x768xf32>,
    %c1_i32 = arith.constant 1 : i32
    %17 = arith.cmpi eq, %arg1, %c1_i32 : i32
    %18 = arith.extui %17 : i1 to i32
    %c0_i32_9 = arith.constant 0 : i32
    %19 = arith.cmpi ne, %18, %c0_i32_9 : i32
    scf.if %19 {
      %c0_10 = arith.constant 0 : index
      %c0_11 = arith.constant 0 : index
      %20 = vector.load %arg8[%c0_10, %c0_11] : memref<8x768xf32, #tpu.memory_space<vmem>>, vector<8x768xf32>
      %c0_12 = arith.constant 0 : index
      %c0_13 = arith.constant 0 : index
      %21 = vector.load %arg3[%c0_12, %c0_13] : memref<8x1xf32, #tpu.memory_space<vmem>>, vector<8x1xf32>
      %22 = vector.broadcast %21 : vector<8x1xf32> to vector<8x768xf32>
      %23 = arith.mulf %20, %22 : vector<8x768xf32>
      %c0_14 = arith.constant 0 : index
      %c0_15 = arith.constant 0 : index
      %24 = vector.load %arg5[%c0_14, %c0_15] : memref<768x128xf32, #tpu.memory_space<vmem>>, vector<768x128xf32>
      %cst_16 = arith.constant dense<0.000000e+00> : vector<8x128xf32>
      %25 = tpu.matmul %23, %24, %cst_16 {dimension_numbers = #tpu.dot_dimension_numbers<[1], [0], [0], [1], [0, 0, 1, 1], [], []>} : vector<8x768xf32>, vector<768x128xf32>, vector<8x128xf32> -> vector<8x128xf32>
      %c0_17 = arith.constant 0 : index
      %c0_18 = arith.constant 0 : index
      %26 = vector.load %arg6[%c0_17, %c0_18] : memref<1x128xf32, #tpu.memory_space<vmem>>, vector<1x128xf32>
      %27 = vector.broadcast %26 : vector<1x128xf32> to vector<8x128xf32>
      %28 = arith.addf %25, %27 : vector<8x128xf32>
      %c0_19 = arith.constant 0 : index
      %c0_20 = arith.constant 0 : index
      %29 = vector.load %arg7[%c0_19, %c0_20] : memref<8x128xf32, #tpu.memory_space<vmem>>, vector<8x128xf32>
      tpu.vector_store %arg7[%c0_19, %c0_20], %28 {strides = array<i32>} : memref<8x128xf32, #tpu.memory_space<vmem>>, vector<8x128xf32>,
    } else {
    }
    return
  }
  func.func @transform_0(%arg0: i32, %arg1: i32) -> (i32, i32) {
    %c0_i32 = arith.constant 0 : i32
    return %arg0, %arg1 : i32, i32
  }
  func.func @transform_1(%arg0: i32, %arg1: i32) -> (i32, i32) {
    %c0_i32 = arith.constant 0 : i32
    %c0_i32_0 = arith.constant 0 : i32
    return %arg0, %c0_i32 : i32, i32
  }
  func.func @transform_2(%arg0: i32, %arg1: i32) -> (i32, i32) {
    %c0_i32 = arith.constant 0 : i32
    %c0_i32_0 = arith.constant 0 : i32
    %c0_i32_1 = arith.constant 0 : i32
    return %c0_i32, %c0_i32_0 : i32, i32
  }
  func.func @transform_3(%arg0: i32, %arg1: i32) -> (i32, i32) {
    %c0_i32 = arith.constant 0 : i32
    %c0_i32_0 = arith.constant 0 : i32
    %c0_i32_1 = arith.constant 0 : i32
    return %c0_i32, %c0_i32_0 : i32, i32
  }
  func.func @transform_4(%arg0: i32, %arg1: i32) -> (i32, i32) {
    %c0_i32 = arith.constant 0 : i32
    %c0_i32_0 = arith.constant 0 : i32
    %c0_i32_1 = arith.constant 0 : i32
    return %c0_i32, %c0_i32_0 : i32, i32
  }
  func.func @transform_5(%arg0: i32, %arg1: i32) -> (i32, i32) {
    %c0_i32 = arith.constant 0 : i32
    %c0_i32_0 = arith.constant 0 : i32
    return %arg0, %c0_i32 : i32, i32
  }
}

</mosaic_0001>

<llo_original>
// kernel: cola_forward.1
$region0: #{cola_forward.1}
  #allocation0 [shape = 'u32[]', space=smem, size = 0x4, offset = 0x4, fixed_abs, tag = 'smem constant byte address 0x4 - core index']
  #allocation1 [shape = 'u32[72,128]{1,0:T(1,128)}', space=vmem, size = 0x9000, scoped, tag = 'internal scratch']
  #allocation2 [shape = 'f32[8,768]{1,0:T(8,128)}', space=vmem, size = 0x6000, scoped, tag = 'scratch operand']
  %s0 = inlined_call_operand.vmem [shape: s32[16,256], index: 0, kind: input, shape index: {}]
  %s1 = inlined_call_operand.vmem [shape: f32[16,1], index: 1, kind: input, shape index: {}]
  %s2 = inlined_call_operand.hbm [shape: bf16[128,768], index: 2, kind: input, shape index: {}]
  %s3 = inlined_call_operand.hbm [shape: f32[768,128], index: 3, kind: input, shape index: {}]
  %s4 = inlined_call_operand.vmem [shape: f32[1,128], index: 4, kind: input, shape index: {}]
  %s5 = inlined_call_operand.vmem [shape: f32[16,128], index: 5, kind: output, shape index: {}]
  %s6 = sld [smem:[#allocation0]]
  $region69: #{cola_forward.1} parent=0
    _
  %s8 = ssub.s32 1, %s6
  %s9 = scalar_select 0, %s8, %s6
  $region1: #{cola_forward.1} parent=0
    #allocation3 [shape = 'u8[196608]{0}', space=vmem, size = 0x30000, scoped, tag = 'input window, operand 2, single buffered']
    #allocation4 [shape = 's32[2]{0}', space=sflag, size = 0x8, scoped, tag = 'scoped memory for cola_forward.1']
    #allocation5 [shape = 'u8[393216]{0}', space=vmem, size = 0x60000, scoped, tag = 'input window, operand 3, single buffered']
    #allocation6 [shape = 's32[1]{0}', space=sflag, size = 0x4, scoped, tag = 'scoped memory for cola_forward.1']
    %10 = vsyncpa [#allocation4], 0
    %11 = vsyncpa [#allocation6], 0
    loop: start=0, step=1, limit=6
    $region2: #{cola_forward.1} parent=1 // loop_pre_header
      _
    $region3: #{cola_forward.1} parent=1 // loop_header
      %s13 = sphi 0, %s17
      %p14 = scmp.ge.s32.totalorder %s13, 6
      %s20 = sphi 0, %s32
      %s21 = sphi 0, %s28
      %s22 = sphi 0, %s20
      %s23 = sphi 0, %s21
      %s24 = sphi 0, %s22
      %s25 = sphi 0, %s23
      %s37 = sphi 0, %s39
      %s40 = sphi 0, %s37
      %s41 = sphi 0, %s40
      %s57 = sphi 0, %s41
      %s63 = sphi 0, %s65
      %s66 = sphi 0, %s63
      %s67 = sphi 0, %s66
      %s83 = sphi 0, %s67
      %s87 = sphi 0, %s87
      %s89 = sphi 0, %s87
      %s90 = sphi 0, %s89
      %s104 = sphi 0, %s90
      %s108 = sphi 0, %s108
      %s110 = sphi 0, %s108
      %s111 = sphi 0, %s110
      %s125 = sphi 0, %s111
      %s129 = sphi 0, %s129
      %s131 = sphi 0, %s129
      %s132 = sphi 0, %s131
      %s146 = sphi 0, %s132
      %s152 = sphi 0, %s154
      %s155 = sphi 0, %s152
      %s156 = sphi 0, %s155
      %s172 = sphi 0, %s156
    $region4: #{cola_forward.1} parent=1 // loop_header_branch
      %16 = sbr.rel (%p14) target = $region8
    $region5: #{cola_forward.1} parent=1 // loop_body
      %s18 = ssub.s32 %s13, 1
      %s19 = ssub.s32 %s13, 2
      %s26 = sadd.s32 1, %s21
      %p27 = scmp.ge.s32.totalorder %s26, 2
      %s28 = scalar_select %p27, 0, %s26
      %s29 = sadd.s32 1, %s20
      %s30 = scalar_select %p27, %s29, %s20
      %p31 = scmp.ge.s32.totalorder %s30, 2
      %s32 = scalar_select %p31, 0, %s30
      %s33 = ssub.s32 %s20, %s32
      %s34 = ssub.s32 %s21, %s28
      %s35 = sor.u32 %s33, %s34
      %p36 = scmp.eq.s32.totalorder %s35, 0
      %s38 = sadd.s32 %s37, 1
      %s39 = scalar_select %p36, %s37, %s38
      %p42 = pneg %p36
      %p43 = scmp.eq.s32.totalorder %s13, 3
      %p44 = por %p42, %p43
      %p45 = scmp.ne.s32.totalorder %s37, %s40
      %p46 = scmp.eq.s32.totalorder %s13, 0
      %p47 = por %p45, %p46
      %p48 = scmp.ne.s32.totalorder %s37, %s40
      %p49 = scmp.eq.s32.totalorder %s18, 3
      %p50 = por %p48, %p49
      %p51 = scmp.ne.s32.totalorder %s40, %s41
      %p52 = scmp.eq.s32.totalorder %s18, 0
      %p53 = por %p51, %p52
      %p54 = scmp.ne.s32.totalorder %s40, %s41
      %p55 = scmp.eq.s32.totalorder %s19, 3
      %p56 = por %p54, %p55
      %p58 = scmp.ne.s32.totalorder %s41, %s57
      %p59 = scmp.eq.s32.totalorder %s19, 0
      %p60 = por %p58, %p59
      %s61 = ssub.s32 %s20, %s32
      %p62 = scmp.eq.s32.totalorder %s61, 0
      %s64 = sadd.s32 %s63, 1
      %s65 = scalar_select %p62, %s63, %s64
      %p68 = pneg %p62
      %p69 = scmp.eq.s32.totalorder %s13, 3
      %p70 = por %p68, %p69
      %p71 = scmp.ne.s32.totalorder %s63, %s66
      %p72 = scmp.eq.s32.totalorder %s13, 0
      %p73 = por %p71, %p72
      %p74 = scmp.ne.s32.totalorder %s63, %s66
      %p75 = scmp.eq.s32.totalorder %s18, 3
      %p76 = por %p74, %p75
      %p77 = scmp.ne.s32.totalorder %s66, %s67
      %p78 = scmp.eq.s32.totalorder %s18, 0
      %p79 = por %p77, %p78
      %p80 = scmp.ne.s32.totalorder %s66, %s67
      %p81 = scmp.eq.s32.totalorder %s19, 3
      %p82 = por %p80, %p81
      %p84 = scmp.ne.s32.totalorder %s67, %s83
      %p85 = scmp.eq.s32.totalorder %s19, 0
      %p86 = por %p84, %p85
      %s88 = sadd.s32 %s87, 1
      %p91 = scmp.eq.s32.totalorder %s13, 3
      %p92 = scmp.ne.s32.totalorder %s87, %s89
      %p93 = scmp.eq.s32.totalorder %s13, 0
      %p94 = por %p92, %p93
      %p95 = scmp.ne.s32.totalorder %s87, %s89
      %p96 = scmp.eq.s32.totalorder %s18, 3
      %p97 = por %p95, %p96
      %p98 = scmp.ne.s32.totalorder %s89, %s90
      %p99 = scmp.eq.s32.totalorder %s18, 0
      %p100 = por %p98, %p99
      %p101 = scmp.ne.s32.totalorder %s89, %s90
      %p102 = scmp.eq.s32.totalorder %s19, 3
      %p103 = por %p101, %p102
      %p105 = scmp.ne.s32.totalorder %s90, %s104
      %p106 = scmp.eq.s32.totalorder %s19, 0
      %p107 = por %p105, %p106
      %s109 = sadd.s32 %s108, 1
      %p112 = scmp.eq.s32.totalorder %s13, 3
      %p113 = scmp.ne.s32.totalorder %s108, %s110
      %p114 = scmp.eq.s32.totalorder %s13, 0
      %p115 = por %p113, %p114
      %p116 = scmp.ne.s32.totalorder %s108, %s110
      %p117 = scmp.eq.s32.totalorder %s18, 3
      %p118 = por %p116, %p117
      %p119 = scmp.ne.s32.totalorder %s110, %s111
      %p120 = scmp.eq.s32.totalorder %s18, 0
      %p121 = por %p119, %p120
      %p122 = scmp.ne.s32.totalorder %s110, %s111
      %p123 = scmp.eq.s32.totalorder %s19, 3
      %p124 = por %p122, %p123
      %p126 = scmp.ne.s32.totalorder %s111, %s125
      %p127 = scmp.eq.s32.totalorder %s19, 0
      %p128 = por %p126, %p127
      %s130 = sadd.s32 %s129, 1
      %p133 = scmp.eq.s32.totalorder %s13, 3
      %p134 = scmp.ne.s32.totalorder %s129, %s131
      %p135 = scmp.eq.s32.totalorder %s13, 0
      %p136 = por %p134, %p135
      %p137 = scmp.ne.s32.totalorder %s129, %s131
      %p138 = scmp.eq.s32.totalorder %s18, 3
      %p139 = por %p137, %p138
      %p140 = scmp.ne.s32.totalorder %s131, %s132
      %p141 = scmp.eq.s32.totalorder %s18, 0
      %p142 = por %p140, %p141
      %p143 = scmp.ne.s32.totalorder %s131, %s132
      %p144 = scmp.eq.s32.totalorder %s19, 3
      %p145 = por %p143, %p144
      %p147 = scmp.ne.s32.totalorder %s132, %s146
      %p148 = scmp.eq.s32.totalorder %s19, 0
      %p149 = por %p147, %p148
      %s150 = ssub.s32 %s20, %s32
      %p151 = scmp.eq.s32.totalorder %s150, 0
      %s153 = sadd.s32 %s152, 1
      %s154 = scalar_select %p151, %s152, %s153
      %p157 = pneg %p151
      %p158 = scmp.eq.s32.totalorder %s13, 3
      %p159 = por %p157, %p158
      %p160 = scmp.ne.s32.totalorder %s152, %s155
      %p161 = scmp.eq.s32.totalorder %s13, 0
      %p162 = por %p160, %p161
      %p163 = scmp.ne.s32.totalorder %s152, %s155
      %p164 = scmp.eq.s32.totalorder %s18, 3
      %p165 = por %p163, %p164
      %p166 = scmp.ne.s32.totalorder %s155, %s156
      %p167 = scmp.eq.s32.totalorder %s18, 0
      %p168 = por %p166, %p167
      %p169 = scmp.ne.s32.totalorder %s155, %s156
      %p170 = scmp.eq.s32.totalorder %s19, 3
      %p171 = por %p169, %p170
      %p173 = scmp.ne.s32.totalorder %s156, %s172
      %p174 = scmp.eq.s32.totalorder %s19, 0
      %p175 = por %p173, %p174
      %p176 = scmp.le.s32.totalorder 1, %s13
      %p177 = scmp.lt.s32.totalorder %s13, 5
      %p178 = pnand %p176, %p177
      %p179 = pneg %p178
      // Predicated region
      $region9: #{cola_forward.1} parent=5 // pred_check
        _
      $region10: #{cola_forward.1} parent=5 // pred_check_branch
        %181 = sbr.rel (%p178) target = $region12
      $region11: #{cola_forward.1} parent=5 // pred_region
        %s182 = ssub.s32 %s13, 1
        // Predicated region
        $region13: #{cola_forward.1} parent=11 // pred_check
          %p183 = pneg %p100
        $region14: #{cola_forward.1} parent=11 // pred_check_branch
          %185 = sbr.rel (%p183) target = $region16
        $region15: #{cola_forward.1} parent=11 // pred_region
          %187 = vsyncadd [#allocation4], 0
          %s188 = sshll.u32 %s2, 4
          %s189 = int_to_ptr.hbm [resolvable:$true] %s188
          %s190 = sshll.u32 [#allocation3], 4
          %s191 = int_to_ptr.vmem [resolvable:$true] %s190
          %196 = dma.hbm_to_vmem [thread:$0]  %s189, 6144, %s191, [#allocation4], 384, 384, 24
        $region16: #{cola_forward.1} parent=11 // pred_fallthru
          _
        // Predicated region
        $region17: #{cola_forward.1} parent=11 // pred_check
          %p197 = pneg %p121
        $region18: #{cola_forward.1} parent=11 // pred_check_branch
          %199 = sbr.rel (%p197) target = $region20
        $region19: #{cola_forward.1} parent=11 // pred_region
          %201 = vsyncadd [#allocation6], 0
          %s202 = sshll.u32 %s3, 4
          %s203 = int_to_ptr.hbm [resolvable:$true] %s202
          %s204 = sshll.u32 [#allocation5], 4
          %s205 = int_to_ptr.vmem [resolvable:$true] %s204
          %210 = dma.hbm_to_vmem [thread:$0]  %s203, 12288, %s205, [#allocation6], 128, 128, 8
        $region20: #{cola_forward.1} parent=11 // pred_fallthru
          _
        // Predicated region
        $region21: #{cola_forward.1} parent=11 // pred_check
          %p211 = pneg %p142
        $region22: #{cola_forward.1} parent=11 // pred_check_branch
          %213 = sbr.rel (%p211) target = $region24
        $region23: #{cola_forward.1} parent=11 // pred_region
          _
        $region24: #{cola_forward.1} parent=11 // pred_fallthru
          _
      $region12: #{cola_forward.1} parent=5 // pred_fallthru
        _
      %p214 = scmp.lt.s32.totalorder %s13, 4
      // Predicated region
      $region25: #{cola_forward.1} parent=5 // pred_check
        %p215 = pneg %p214
      $region26: #{cola_forward.1} parent=5 // pred_check_branch
        %217 = sbr.rel (%p215) target = $region28
      $region27: #{cola_forward.1} parent=5 // pred_region
        // Predicated region
        $region29: #{cola_forward.1} parent=27 // pred_check
          %p218 = pneg %p47
        $region30: #{cola_forward.1} parent=27 // pred_check_branch
          %220 = sbr.rel (%p218) target = $region32
        $region31: #{cola_forward.1} parent=27 // pred_region
          %p221 = scmp.lt.s32.totalorder %s20, 1
          %s222 = scalar_select %p221, %s20, 1
          %p223 = scmp.lt.s32.totalorder %s21, 1
          %s224 = scalar_select %p223, %s21, 1
          %s225 = smul.addr %s222, 2
          %s226 = sadd.s32 %s224, %s225
          %s227 = smul.addr %s226, 8
          %s228 = scalar_lea.vmem %s0, %s227
        $region32: #{cola_forward.1} parent=27 // pred_fallthru
          _
        // Predicated region
        $region33: #{cola_forward.1} parent=27 // pred_check
          %p229 = pneg %p73
        $region34: #{cola_forward.1} parent=27 // pred_check_branch
          %231 = sbr.rel (%p229) target = $region36
        $region35: #{cola_forward.1} parent=27 // pred_region
          %p232 = scmp.lt.s32.totalorder %s20, 1
          %s233 = scalar_select %p232, %s20, 1
          %s234 = smul.addr %s233, 8
          %s235 = scalar_lea.vmem %s1, %s234
        $region36: #{cola_forward.1} parent=27 // pred_fallthru
          _
      $region28: #{cola_forward.1} parent=5 // pred_fallthru
        _
      %p236 = scmp.le.s32.totalorder 1, %s13
      %p237 = scmp.lt.s32.totalorder %s13, 5
      %p238 = pnand %p236, %p237
      %p239 = pneg %p238
      // Predicated region
      $region37: #{cola_forward.1} parent=5 // pred_check
        _
      $region38: #{cola_forward.1} parent=5 // pred_check_branch
        %241 = sbr.rel (%p238) target = $region40
      $region39: #{cola_forward.1} parent=5 // pred_region
        %s242 = ssub.s32 %s13, 1
        // Predicated region
        $region41: #{cola_forward.1} parent=39 // pred_check
          %p243 = pneg %p100
        $region42: #{cola_forward.1} parent=39 // pred_check_branch
          %245 = sbr.rel (%p243) target = $region44
        $region43: #{cola_forward.1} parent=39 // pred_region
          %247 = dma.done [#allocation4], 6144
        $region44: #{cola_forward.1} parent=39 // pred_fallthru
          _
        // Predicated region
        $region45: #{cola_forward.1} parent=39 // pred_check
          %p248 = pneg %p121
        $region46: #{cola_forward.1} parent=39 // pred_check_branch
          %250 = sbr.rel (%p248) target = $region48
        $region47: #{cola_forward.1} parent=39 // pred_region
          %252 = dma.done [#allocation6], 12288
        $region48: #{cola_forward.1} parent=39 // pred_fallthru
          _
        %p253 = scmp.lt.s32.totalorder %s22, 1
        %s254 = scalar_select %p253, %s22, 1
        %p255 = scmp.lt.s32.totalorder %s23, 1
        %s256 = scalar_select %p255, %s23, 1
        %s257 = smul.addr %s254, 2
        %s258 = sadd.s32 %s256, %s257
        %s259 = smul.addr %s258, 8
        %s260 = scalar_lea.vmem %s0, %s259
        %p261 = pneg %p53
        %p262 = pneg %p50
        %p263 = scmp.lt.s32.totalorder %s22, 1
        %s264 = scalar_select %p263, %s22, 1
        %s265 = smul.addr %s264, 8
        %s266 = scalar_lea.vmem %s1, %s265
        %p267 = pneg %p79
        %p268 = pneg %p76
        %p269 = pneg %p100
        %p270 = pneg %p97
        %p271 = pneg %p121
        %p272 = pneg %p118
        %p273 = pneg %p142
        %p274 = pneg %p139
        %p275 = pneg %p168
        %p276 = pneg %p165
        %p277 = scmp.lt.s32.totalorder %s22, 1
        %s278 = scalar_select %p277, %s22, 1
        %s279 = smul.addr %s278, 8
        %s280 = scalar_lea.vmem %s5, %s279
        %p281 = scmp.lt.s32.totalorder %s22, 1
        %s282 = scalar_select %p281, %s22, 1
        %p283 = scmp.lt.s32.totalorder %s23, 1
        %s284 = scalar_select %p283, %s23, 1
        %s285 = smul.addr %s282, 2
        %s286 = sadd.s32 %s284, %s285
        %s287 = smul.addr %s286, 8
        %s288 = scalar_lea.vmem %s0, %s287
        %p289 = scmp.lt.s32.totalorder %s22, 1
        %s290 = scalar_select %p289, %s22, 1
        %s291 = smul.addr %s290, 8
        %s292 = scalar_lea.vmem %s1, %s291
        %p293 = scmp.lt.s32.totalorder %s22, 1
        %s294 = scalar_select %p293, %s22, 1
        %s295 = smul.addr %s294, 8
        %s296 = scalar_lea.vmem %s5, %s295
        %p297 = scmp.eq.s32.totalorder %s23, 0
        // Predicated region
        $region49: #{cola_forward.1} parent=39 // pred_check
          %p298 = pneg %p297
        $region50: #{cola_forward.1} parent=39 // pred_check_branch
          %300 = sbr.rel (%p298) target = $region52
        $region51: #{cola_forward.1} parent=39 // pred_region
          %301 = vst [vmem:[#allocation2] sm:$0xff] 0.0
          %302 = vst [vmem:[#allocation2 + $0x8] sm:$0xff] 0.0
          %303 = vst [vmem:[#allocation2 + $0x10] sm:$0xff] 0.0
          %304 = vst [vmem:[#allocation2 + $0x18] sm:$0xff] 0.0
          %305 = vst [vmem:[#allocation2 + $0x20] sm:$0xff] 0.0
          %306 = vst [vmem:[#allocation2 + $0x28] sm:$0xff] 0.0
        $region52: #{cola_forward.1} parent=39 // pred_fallthru
          _
        %v307 = vld [vmem:[%s288] sm:$0xff]
        %v308 = vlaneseq
        %v309 = vshrl.u32 %v308, 7
        %v310 = vadd.s32 %v309, 8
        %v311 = vadd.s32 %v309, 16
        %v312 = vadd.s32 %v309, 24
        %v313 = vadd.s32 %v309, 32
        %v314 = vadd.s32 %v309, 40
        %v315 = vadd.s32 %v309, 48
        %v316 = vadd.s32 %v309, 56
        %v317 = vadd.s32 %v309, 64
        %v318 = vadd.s32 %v309, 72
        %v319 = vadd.s32 %v309, 80
        %v320 = vadd.s32 %v309, 88
        %v321 = vadd.s32 %v309, 96
        %v322 = vadd.s32 %v309, 104
        %v323 = vadd.s32 %v309, 112
        %v324 = vadd.s32 %v309, 120
        %v325 = vrot.slane %v307, 1
        %v326 = vrot.slane %v307, 2
        %v327 = vrot.slane %v307, 3
        %v328 = vrot.slane %v307, 4
        %v329 = vrot.slane %v307, 5
        %v330 = vrot.slane %v307, 6
        %v331 = vrot.slane %v307, 7
        %v332 = vperm.slane %v307, 0
        %v333 = vperm.slane %v325, 0
        %v334 = vperm.slane %v326, 0
        %v335 = vperm.slane %v327, 0
        %v336 = vperm.slane %v328, 0
        %v337 = vperm.slane %v329, 0
        %v338 = vperm.slane %v330, 0
        %v339 = vperm.slane %v331, 0
        %vm340 = vcmp.eq.s32.totalorder %v332, %v309
        %vm341 = vcmp.eq.s32.totalorder %v332, %v310
        %vm342 = vcmp.eq.s32.totalorder %v332, %v311
        %vm343 = vcmp.eq.s32.totalorder %v332, %v312
        %vm344 = vcmp.eq.s32.totalorder %v332, %v313
        %vm345 = vcmp.eq.s32.totalorder %v332, %v314
        %vm346 = vcmp.eq.s32.totalorder %v332, %v315
        %vm347 = vcmp.eq.s32.totalorder %v332, %v316
        %vm348 = vcmp.eq.s32.totalorder %v332, %v317
        %vm349 = vcmp.eq.s32.totalorder %v332, %v318
        %vm350 = vcmp.eq.s32.totalorder %v332, %v319
        %vm351 = vcmp.eq.s32.totalorder %v332, %v320
        %vm352 = vcmp.eq.s32.totalorder %v332, %v321
        %vm353 = vcmp.eq.s32.totalorder %v332, %v322
        %vm354 = vcmp.eq.s32.totalorder %v332, %v323
        %vm355 = vcmp.eq.s32.totalorder %v332, %v324
        %vm356 = vcmp.eq.s32.totalorder %v333, %v309
        %vm357 = vcmp.eq.s32.totalorder %v333, %v310
        %vm358 = vcmp.eq.s32.totalorder %v333, %v311
        %vm359 = vcmp.eq.s32.totalorder %v333, %v312
        %vm360 = vcmp.eq.s32.totalorder %v333, %v313
        %vm361 = vcmp.eq.s32.totalorder %v333, %v314
        %vm362 = vcmp.eq.s32.totalorder %v333, %v315
        %vm363 = vcmp.eq.s32.totalorder %v333, %v316
        %vm364 = vcmp.eq.s32.totalorder %v333, %v317
        %vm365 = vcmp.eq.s32.totalorder %v333, %v318
        %vm366 = vcmp.eq.s32.totalorder %v333, %v319
        %vm367 = vcmp.eq.s32.totalorder %v333, %v320
        %vm368 = vcmp.eq.s32.totalorder %v333, %v321
        %vm369 = vcmp.eq.s32.totalorder %v333, %v322
        %vm370 = vcmp.eq.s32.totalorder %v333, %v323
        %vm371 = vcmp.eq.s32.totalorder %v333, %v324
        %vm372 = vcmp.eq.s32.totalorder %v334, %v309
        %vm373 = vcmp.eq.s32.totalorder %v334, %v310
        %vm374 = vcmp.eq.s32.totalorder %v334, %v311
        %vm375 = vcmp.eq.s32.totalorder %v334, %v312
        %vm376 = vcmp.eq.s32.totalorder %v334, %v313
        %vm377 = vcmp.eq.s32.totalorder %v334, %v314
        %vm378 = vcmp.eq.s32.totalorder %v334, %v315
        %vm379 = vcmp.eq.s32.totalorder %v334, %v316
        %vm380 = vcmp.eq.s32.totalorder %v334, %v317
        %vm381 = vcmp.eq.s32.totalorder %v334, %v318
        %vm382 = vcmp.eq.s32.totalorder %v334, %v319
        %vm383 = vcmp.eq.s32.totalorder %v334, %v320
        %vm384 = vcmp.eq.s32.totalorder %v334, %v321
        %vm385 = vcmp.eq.s32.totalorder %v334, %v322
        %vm386 = vcmp.eq.s32.totalorder %v334, %v323
        %vm387 = vcmp.eq.s32.totalorder %v334, %v324
        %vm388 = vcmp.eq.s32.totalorder %v335, %v309
        %vm389 = vcmp.eq.s32.totalorder %v335, %v310
        %vm390 = vcmp.eq.s32.totalorder %v335, %v311
        %vm391 = vcmp.eq.s32.totalorder %v335, %v312
        %vm392 = vcmp.eq.s32.totalorder %v335, %v313
        %vm393 = vcmp.eq.s32.totalorder %v335, %v314
        %vm394 = vcmp.eq.s32.totalorder %v335, %v315
        %vm395 = vcmp.eq.s32.totalorder %v335, %v316
        %vm396 = vcmp.eq.s32.totalorder %v335, %v317
        %vm397 = vcmp.eq.s32.totalorder %v335, %v318
        %vm398 = vcmp.eq.s32.totalorder %v335, %v319
        %vm399 = vcmp.eq.s32.totalorder %v335, %v320
        %vm400 = vcmp.eq.s32.totalorder %v335, %v321
        %vm401 = vcmp.eq.s32.totalorder %v335, %v322
        %vm402 = vcmp.eq.s32.totalorder %v335, %v323
        %vm403 = vcmp.eq.s32.totalorder %v335, %v324
        %vm404 = vcmp.eq.s32.totalorder %v336, %v309
        %vm405 = vcmp.eq.s32.totalorder %v336, %v310
        %vm406 = vcmp.eq.s32.totalorder %v336, %v311
        %vm407 = vcmp.eq.s32.totalorder %v336, %v312
        %vm408 = vcmp.eq.s32.totalorder %v336, %v313
        %vm409 = vcmp.eq.s32.totalorder %v336, %v314
        %vm410 = vcmp.eq.s32.totalorder %v336, %v315
        %vm411 = vcmp.eq.s32.totalorder %v336, %v316
        %vm412 = vcmp.eq.s32.totalorder %v336, %v317
        %vm413 = vcmp.eq.s32.totalorder %v336, %v318
        %vm414 = vcmp.eq.s32.totalorder %v336, %v319
        %vm415 = vcmp.eq.s32.totalorder %v336, %v320
        %vm416 = vcmp.eq.s32.totalorder %v336, %v321
        %vm417 = vcmp.eq.s32.totalorder %v336, %v322
        %vm418 = vcmp.eq.s32.totalorder %v336, %v323
        %vm419 = vcmp.eq.s32.totalorder %v336, %v324
        %vm420 = vcmp.eq.s32.totalorder %v337, %v309
        %vm421 = vcmp.eq.s32.totalorder %v337, %v310
        %vm422 = vcmp.eq.s32.totalorder %v337, %v311
        %vm423 = vcmp.eq.s32.totalorder %v337, %v312
        %vm424 = vcmp.eq.s32.totalorder %v337, %v313
        %vm425 = vcmp.eq.s32.totalorder %v337, %v314
        %vm426 = vcmp.eq.s32.totalorder %v337, %v315
        %vm427 = vcmp.eq.s32.totalorder %v337, %v316
        %vm428 = vcmp.eq.s32.totalorder %v337, %v317
        %vm429 = vcmp.eq.s32.totalorder %v337, %v318
        %vm430 = vcmp.eq.s32.totalorder %v337, %v319
        %vm431 = vcmp.eq.s32.totalorder %v337, %v320
        %vm432 = vcmp.eq.s32.totalorder %v337, %v321
        %vm433 = vcmp.eq.s32.totalorder %v337, %v322
        %vm434 = vcmp.eq.s32.totalorder %v337, %v323
        %vm435 = vcmp.eq.s32.totalorder %v337, %v324
        %vm436 = vcmp.eq.s32.totalorder %v338, %v309
        %vm437 = vcmp.eq.s32.totalorder %v338, %v310
        %vm438 = vcmp.eq.s32.totalorder %v338, %v311
        %vm439 = vcmp.eq.s32.totalorder %v338, %v312
        %vm440 = vcmp.eq.s32.totalorder %v338, %v313
        %vm441 = vcmp.eq.s32.totalorder %v338, %v314
        %vm442 = vcmp.eq.s32.totalorder %v338, %v315
        %vm443 = vcmp.eq.s32.totalorder %v338, %v316
        %vm444 = vcmp.eq.s32.totalorder %v338, %v317
        %vm445 = vcmp.eq.s32.totalorder %v338, %v318
        %vm446 = vcmp.eq.s32.totalorder %v338, %v319
        %vm447 = vcmp.eq.s32.totalorder %v338, %v320
        %vm448 = vcmp.eq.s32.totalorder %v338, %v321
        %vm449 = vcmp.eq.s32.totalorder %v338, %v322
        %vm450 = vcmp.eq.s32.totalorder %v338, %v323
        %vm451 = vcmp.eq.s32.totalorder %v338, %v324
        %vm452 = vcmp.eq.s32.totalorder %v339, %v309
        %vm453 = vcmp.eq.s32.totalorder %v339, %v310
        %vm454 = vcmp.eq.s32.totalorder %v339, %v311
        %vm455 = vcmp.eq.s32.totalorder %v339, %v312
        %vm456 = vcmp.eq.s32.totalorder %v339, %v313
        %vm457 = vcmp.eq.s32.totalorder %v339, %v314
        %vm458 = vcmp.eq.s32.totalorder %v339, %v315
        %vm459 = vcmp.eq.s32.totalorder %v339, %v316
        %vm460 = vcmp.eq.s32.totalorder %v339, %v317
        %vm461 = vcmp.eq.s32.totalorder %v339, %v318
        %vm462 = vcmp.eq.s32.totalorder %v339, %v319
        %vm463 = vcmp.eq.s32.totalorder %v339, %v320
        %vm464 = vcmp.eq.s32.totalorder %v339, %v321
        %vm465 = vcmp.eq.s32.totalorder %v339, %v322
        %vm466 = vcmp.eq.s32.totalorder %v339, %v323
        %vm467 = vcmp.eq.s32.totalorder %v339, %v324
        %v468 = vsel %vm340, 1, 0
        %v469 = vsel %vm341, 1, 0
        %v470 = vsel %vm342, 1, 0
        %v471 = vsel %vm343, 1, 0
        %v472 = vsel %vm344, 1, 0
        %v473 = vsel %vm345, 1, 0
        %v474 = vsel %vm346, 1, 0
        %v475 = vsel %vm347, 1, 0
        %v476 = vsel %vm348, 1, 0
        %v477 = vsel %vm349, 1, 0
        %v478 = vsel %vm350, 1, 0
        %v479 = vsel %vm351, 1, 0
        %v480 = vsel %vm352, 1, 0
        %v481 = vsel %vm353, 1, 0
        %v482 = vsel %vm354, 1, 0
        %v483 = vsel %vm355, 1, 0
        %v484 = vsel %vm356, 1, 0
        %v485 = vsel %vm357, 1, 0
        %v486 = vsel %vm358, 1, 0
        %v487 = vsel %vm359, 1, 0
        %v488 = vsel %vm360, 1, 0
        %v489 = vsel %vm361, 1, 0
        %v490 = vsel %vm362, 1, 0
        %v491 = vsel %vm363, 1, 0
        %v492 = vsel %vm364, 1, 0
        %v493 = vsel %vm365, 1, 0
        %v494 = vsel %vm366, 1, 0
        %v495 = vsel %vm367, 1, 0
        %v496 = vsel %vm368, 1, 0
        %v497 = vsel %vm369, 1, 0
        %v498 = vsel %vm370, 1, 0
        %v499 = vsel %vm371, 1, 0
        %v500 = vsel %vm372, 1, 0
        %v501 = vsel %vm373, 1, 0
        %v502 = vsel %vm374, 1, 0
        %v503 = vsel %vm375, 1, 0
        %v504 = vsel %vm376, 1, 0
        %v505 = vsel %vm377, 1, 0
        %v506 = vsel %vm378, 1, 0
        %v507 = vsel %vm379, 1, 0
        %v508 = vsel %vm380, 1, 0
        %v509 = vsel %vm381, 1, 0
        %v510 = vsel %vm382, 1, 0
        %v511 = vsel %vm383, 1, 0
        %v512 = vsel %vm384, 1, 0
        %v513 = vsel %vm385, 1, 0
        %v514 = vsel %vm386, 1, 0
        %v515 = vsel %vm387, 1, 0
        %v516 = vsel %vm388, 1, 0
        %v517 = vsel %vm389, 1, 0
        %v518 = vsel %vm390, 1, 0
        %v519 = vsel %vm391, 1, 0
        %v520 = vsel %vm392, 1, 0
        %v521 = vsel %vm393, 1, 0
        %v522 = vsel %vm394, 1, 0
        %v523 = vsel %vm395, 1, 0
        %v524 = vsel %vm396, 1, 0
        %v525 = vsel %vm397, 1, 0
        %v526 = vsel %vm398, 1, 0
        %v527 = vsel %vm399, 1, 0
        %v528 = vsel %vm400, 1, 0
        %v529 = vsel %vm401, 1, 0
        %v530 = vsel %vm402, 1, 0
        %v531 = vsel %vm403, 1, 0
        %v532 = vsel %vm404, 1, 0
        %v533 = vsel %vm405, 1, 0
        %v534 = vsel %vm406, 1, 0
        %v535 = vsel %vm407, 1, 0
        %v536 = vsel %vm408, 1, 0
        %v537 = vsel %vm409, 1, 0
        %v538 = vsel %vm410, 1, 0
        %v539 = vsel %vm411, 1, 0
        %v540 = vsel %vm412, 1, 0
        %v541 = vsel %vm413, 1, 0
        %v542 = vsel %vm414, 1, 0
        %v543 = vsel %vm415, 1, 0
        %v544 = vsel %vm416, 1, 0
        %v545 = vsel %vm417, 1, 0
        %v546 = vsel %vm418, 1, 0
        %v547 = vsel %vm419, 1, 0
        %v548 = vsel %vm420, 1, 0
        %v549 = vsel %vm421, 1, 0
        %v550 = vsel %vm422, 1, 0
        %v551 = vsel %vm423, 1, 0
        %v552 = vsel %vm424, 1, 0
        %v553 = vsel %vm425, 1, 0
        %v554 = vsel %vm426, 1, 0
        %v555 = vsel %vm427, 1, 0
        %v556 = vsel %vm428, 1, 0
        %v557 = vsel %vm429, 1, 0
        %v558 = vsel %vm430, 1, 0
        %v559 = vsel %vm431, 1, 0
        %v560 = vsel %vm432, 1, 0
        %v561 = vsel %vm433, 1, 0
        %v562 = vsel %vm434, 1, 0
        %v563 = vsel %vm435, 1, 0
        %v564 = vsel %vm436, 1, 0
        %v565 = vsel %vm437, 1, 0
        %v566 = vsel %vm438, 1, 0
        %v567 = vsel %vm439, 1, 0
        %v568 = vsel %vm440, 1, 0
        %v569 = vsel %vm441, 1, 0
        %v570 = vsel %vm442, 1, 0
        %v571 = vsel %vm443, 1, 0
        %v572 = vsel %vm444, 1, 0
        %v573 = vsel %vm445, 1, 0
        %v574 = vsel %vm446, 1, 0
        %v575 = vsel %vm447, 1, 0
        %v576 = vsel %vm448, 1, 0
        %v577 = vsel %vm449, 1, 0
        %v578 = vsel %vm450, 1, 0
        %v579 = vsel %vm451, 1, 0
        %v580 = vsel %vm452, 1, 0
        %v581 = vsel %vm453, 1, 0
        %v582 = vsel %vm454, 1, 0
        %v583 = vsel %vm455, 1, 0
        %v584 = vsel %vm456, 1, 0
        %v585 = vsel %vm457, 1, 0
        %v586 = vsel %vm458, 1, 0
        %v587 = vsel %vm459, 1, 0
        %v588 = vsel %vm460, 1, 0
        %v589 = vsel %vm461, 1, 0
        %v590 = vsel %vm462, 1, 0
        %v591 = vsel %vm463, 1, 0
        %v592 = vsel %vm464, 1, 0
        %v593 = vsel %vm465, 1, 0
        %v594 = vsel %vm466, 1, 0
        %v595 = vsel %vm467, 1, 0
        %v596 = vcvt.s32.f32 %v468
        %v597 = vcvt.s32.f32 %v469
        %v598 = vcvt.s32.f32 %v470
        %v599 = vcvt.s32.f32 %v471
        %v600 = vcvt.s32.f32 %v472
        %v601 = vcvt.s32.f32 %v473
        %v602 = vcvt.s32.f32 %v474
        %v603 = vcvt.s32.f32 %v475
        %v604 = vcvt.s32.f32 %v476
        %v605 = vcvt.s32.f32 %v477
        %v606 = vcvt.s32.f32 %v478
        %v607 = vcvt.s32.f32 %v479
        %v608 = vcvt.s32.f32 %v480
        %v609 = vcvt.s32.f32 %v481
        %v610 = vcvt.s32.f32 %v482
        %v611 = vcvt.s32.f32 %v483
        %v612 = vcvt.s32.f32 %v484
        %v613 = vcvt.s32.f32 %v485
        %v614 = vcvt.s32.f32 %v486
        %v615 = vcvt.s32.f32 %v487
        %v616 = vcvt.s32.f32 %v488
        %v617 = vcvt.s32.f32 %v489
        %v618 = vcvt.s32.f32 %v490
        %v619 = vcvt.s32.f32 %v491
        %v620 = vcvt.s32.f32 %v492
        %v621 = vcvt.s32.f32 %v493
        %v622 = vcvt.s32.f32 %v494
        %v623 = vcvt.s32.f32 %v495
        %v624 = vcvt.s32.f32 %v496
        %v625 = vcvt.s32.f32 %v497
        %v626 = vcvt.s32.f32 %v498
        %v627 = vcvt.s32.f32 %v499
        %v628 = vcvt.s32.f32 %v500
        %v629 = vcvt.s32.f32 %v501
        %v630 = vcvt.s32.f32 %v502
        %v631 = vcvt.s32.f32 %v503
        %v632 = vcvt.s32.f32 %v504
        %v633 = vcvt.s32.f32 %v505
        %v634 = vcvt.s32.f32 %v506
        %v635 = vcvt.s32.f32 %v507
        %v636 = vcvt.s32.f32 %v508
        %v637 = vcvt.s32.f32 %v509
        %v638 = vcvt.s32.f32 %v510
        %v639 = vcvt.s32.f32 %v511
        %v640 = vcvt.s32.f32 %v512
        %v641 = vcvt.s32.f32 %v513
        %v642 = vcvt.s32.f32 %v514
        %v643 = vcvt.s32.f32 %v515
        %v644 = vcvt.s32.f32 %v516
        %v645 = vcvt.s32.f32 %v517
        %v646 = vcvt.s32.f32 %v518
        %v647 = vcvt.s32.f32 %v519
        %v648 = vcvt.s32.f32 %v520
        %v649 = vcvt.s32.f32 %v521
        %v650 = vcvt.s32.f32 %v522
        %v651 = vcvt.s32.f32 %v523
        %v652 = vcvt.s32.f32 %v524
        %v653 = vcvt.s32.f32 %v525
        %v654 = vcvt.s32.f32 %v526
        %v655 = vcvt.s32.f32 %v527
        %v656 = vcvt.s32.f32 %v528
        %v657 = vcvt.s32.f32 %v529
        %v658 = vcvt.s32.f32 %v530
        %v659 = vcvt.s32.f32 %v531
        %v660 = vcvt.s32.f32 %v532
        %v661 = vcvt.s32.f32 %v533
        %v662 = vcvt.s32.f32 %v534
        %v663 = vcvt.s32.f32 %v535
        %v664 = vcvt.s32.f32 %v536
        %v665 = vcvt.s32.f32 %v537
        %v666 = vcvt.s32.f32 %v538
        %v667 = vcvt.s32.f32 %v539
        %v668 = vcvt.s32.f32 %v540
        %v669 = vcvt.s32.f32 %v541
        %v670 = vcvt.s32.f32 %v542
        %v671 = vcvt.s32.f32 %v543
        %v672 = vcvt.s32.f32 %v544
        %v673 = vcvt.s32.f32 %v545
        %v674 = vcvt.s32.f32 %v546
        %v675 = vcvt.s32.f32 %v547
        %v676 = vcvt.s32.f32 %v548
        %v677 = vcvt.s32.f32 %v549
        %v678 = vcvt.s32.f32 %v550
        %v679 = vcvt.s32.f32 %v551
        %v680 = vcvt.s32.f32 %v552
        %v681 = vcvt.s32.f32 %v553
        %v682 = vcvt.s32.f32 %v554
        %v683 = vcvt.s32.f32 %v555
        %v684 = vcvt.s32.f32 %v556
        %v685 = vcvt.s32.f32 %v557
        %v686 = vcvt.s32.f32 %v558
        %v687 = vcvt.s32.f32 %v559
        %v688 = vcvt.s32.f32 %v560
        %v689 = vcvt.s32.f32 %v561
        %v690 = vcvt.s32.f32 %v562
        %v691 = vcvt.s32.f32 %v563
        %v692 = vcvt.s32.f32 %v564
        %v693 = vcvt.s32.f32 %v565
        %v694 = vcvt.s32.f32 %v566
        %v695 = vcvt.s32.f32 %v567
        %v696 = vcvt.s32.f32 %v568
        %v697 = vcvt.s32.f32 %v569
        %v698 = vcvt.s32.f32 %v570
        %v699 = vcvt.s32.f32 %v571
        %v700 = vcvt.s32.f32 %v572
        %v701 = vcvt.s32.f32 %v573
        %v702 = vcvt.s32.f32 %v574
        %v703 = vcvt.s32.f32 %v575
        %v704 = vcvt.s32.f32 %v576
        %v705 = vcvt.s32.f32 %v577
        %v706 = vcvt.s32.f32 %v578
        %v707 = vcvt.s32.f32 %v579
        %v708 = vcvt.s32.f32 %v580
        %v709 = vcvt.s32.f32 %v581
        %v710 = vcvt.s32.f32 %v582
        %v711 = vcvt.s32.f32 %v583
        %v712 = vcvt.s32.f32 %v584
        %v713 = vcvt.s32.f32 %v585
        %v714 = vcvt.s32.f32 %v586
        %v715 = vcvt.s32.f32 %v587
        %v716 = vcvt.s32.f32 %v588
        %v717 = vcvt.s32.f32 %v589
        %v718 = vcvt.s32.f32 %v590
        %v719 = vcvt.s32.f32 %v591
        %v720 = vcvt.s32.f32 %v592
        %v721 = vcvt.s32.f32 %v593
        %v722 = vcvt.s32.f32 %v594
        %v723 = vcvt.s32.f32 %v595
        %724 = vadd.xlane.f32.xlu0 %v596
        %v725 = vpop.xlane.xlu0 %724
        %726 = vadd.xlane.f32.xlu0 %v597
        %v727 = vpop.xlane.xlu0 %726
        %728 = vadd.xlane.f32.xlu0 %v598
        %v729 = vpop.xlane.xlu0 %728
        %730 = vadd.xlane.f32.xlu0 %v599
        %v731 = vpop.xlane.xlu0 %730
        %732 = vadd.xlane.f32.xlu0 %v600
        %v733 = vpop.xlane.xlu0 %732
        %734 = vadd.xlane.f32.xlu0 %v601
        %v735 = vpop.xlane.xlu0 %734
        %736 = vadd.xlane.f32.xlu0 %v602
        %v737 = vpop.xlane.xlu0 %736
        %738 = vadd.xlane.f32.xlu0 %v603
        %v739 = vpop.xlane.xlu0 %738
        %740 = vadd.xlane.f32.xlu0 %v604
        %v741 = vpop.xlane.xlu0 %740
        %742 = vadd.xlane.f32.xlu0 %v605
        %v743 = vpop.xlane.xlu0 %742
        %744 = vadd.xlane.f32.xlu0 %v606
        %v745 = vpop.xlane.xlu0 %744
        %746 = vadd.xlane.f32.xlu0 %v607
        %v747 = vpop.xlane.xlu0 %746
        %748 = vadd.xlane.f32.xlu0 %v608
        %v749 = vpop.xlane.xlu0 %748
        %750 = vadd.xlane.f32.xlu0 %v609
        %v751 = vpop.xlane.xlu0 %750
        %752 = vadd.xlane.f32.xlu0 %v610
        %v753 = vpop.xlane.xlu0 %752
        %754 = vadd.xlane.f32.xlu0 %v611
        %v755 = vpop.xlane.xlu0 %754
        %756 = vadd.xlane.f32.xlu0 %v612
        %v757 = vpop.xlane.xlu0 %756
        %758 = vadd.xlane.f32.xlu0 %v613
        %v759 = vpop.xlane.xlu0 %758
        %760 = vadd.xlane.f32.xlu0 %v614
        %v761 = vpop.xlane.xlu0 %760
        %762 = vadd.xlane.f32.xlu0 %v615
        %v763 = vpop.xlane.xlu0 %762
        %764 = vadd.xlane.f32.xlu0 %v616
        %v765 = vpop.xlane.xlu0 %764
        %766 = vadd.xlane.f32.xlu0 %v617
        %v767 = vpop.xlane.xlu0 %766
        %768 = vadd.xlane.f32.xlu0 %v618
        %v769 = vpop.xlane.xlu0 %768
        %770 = vadd.xlane.f32.xlu0 %v619
        %v771 = vpop.xlane.xlu0 %770
        %772 = vadd.xlane.f32.xlu0 %v620
        %v773 = vpop.xlane.xlu0 %772
        %774 = vadd.xlane.f32.xlu0 %v621
        %v775 = vpop.xlane.xlu0 %774
        %776 = vadd.xlane.f32.xlu0 %v622
        %v777 = vpop.xlane.xlu0 %776
        %778 = vadd.xlane.f32.xlu0 %v623
        %v779 = vpop.xlane.xlu0 %778
        %780 = vadd.xlane.f32.xlu0 %v624
        %v781 = vpop.xlane.xlu0 %780
        %782 = vadd.xlane.f32.xlu0 %v625
        %v783 = vpop.xlane.xlu0 %782
        %784 = vadd.xlane.f32.xlu0 %v626
        %v785 = vpop.xlane.xlu0 %784
        %786 = vadd.xlane.f32.xlu0 %v627
        %v787 = vpop.xlane.xlu0 %786
        %788 = vadd.xlane.f32.xlu0 %v628
        %v789 = vpop.xlane.xlu0 %788
        %790 = vadd.xlane.f32.xlu0 %v629
        %v791 = vpop.xlane.xlu0 %790
        %792 = vadd.xlane.f32.xlu0 %v630
        %v793 = vpop.xlane.xlu0 %792
        %794 = vadd.xlane.f32.xlu0 %v631
        %v795 = vpop.xlane.xlu0 %794
        %796 = vadd.xlane.f32.xlu0 %v632
        %v797 = vpop.xlane.xlu0 %796
        %798 = vadd.xlane.f32.xlu0 %v633
        %v799 = vpop.xlane.xlu0 %798
        %800 = vadd.xlane.f32.xlu0 %v634
        %v801 = vpop.xlane.xlu0 %800
        %802 = vadd.xlane.f32.xlu0 %v635
        %v803 = vpop.xlane.xlu0 %802
        %804 = vadd.xlane.f32.xlu0 %v636
        %v805 = vpop.xlane.xlu0 %804
        %806 = vadd.xlane.f32.xlu0 %v637
        %v807 = vpop.xlane.xlu0 %806
        %808 = vadd.xlane.f32.xlu0 %v638
        %v809 = vpop.xlane.xlu0 %808
        %810 = vadd.xlane.f32.xlu0 %v639
        %v811 = vpop.xlane.xlu0 %810
        %812 = vadd.xlane.f32.xlu0 %v640
        %v813 = vpop.xlane.xlu0 %812
        %814 = vadd.xlane.f32.xlu0 %v641
        %v815 = vpop.xlane.xlu0 %814
        %816 = vadd.xlane.f32.xlu0 %v642
        %v817 = vpop.xlane.xlu0 %816
        %818 = vadd.xlane.f32.xlu0 %v643
        %v819 = vpop.xlane.xlu0 %818
        %820 = vadd.xlane.f32.xlu0 %v644
        %v821 = vpop.xlane.xlu0 %820
        %822 = vadd.xlane.f32.xlu0 %v645
        %v823 = vpop.xlane.xlu0 %822
        %824 = vadd.xlane.f32.xlu0 %v646
        %v825 = vpop.xlane.xlu0 %824
        %826 = vadd.xlane.f32.xlu0 %v647
        %v827 = vpop.xlane.xlu0 %826
        %828 = vadd.xlane.f32.xlu0 %v648
        %v829 = vpop.xlane.xlu0 %828
        %830 = vadd.xlane.f32.xlu0 %v649
        %v831 = vpop.xlane.xlu0 %830
        %832 = vadd.xlane.f32.xlu0 %v650
        %v833 = vpop.xlane.xlu0 %832
        %834 = vadd.xlane.f32.xlu0 %v651
        %v835 = vpop.xlane.xlu0 %834
        %836 = vadd.xlane.f32.xlu0 %v652
        %v837 = vpop.xlane.xlu0 %836
        %838 = vadd.xlane.f32.xlu0 %v653
        %v839 = vpop.xlane.xlu0 %838
        %840 = vadd.xlane.f32.xlu0 %v654
        %v841 = vpop.xlane.xlu0 %840
        %842 = vadd.xlane.f32.xlu0 %v655
        %v843 = vpop.xlane.xlu0 %842
        %844 = vadd.xlane.f32.xlu0 %v656
        %v845 = vpop.xlane.xlu0 %844
        %846 = vadd.xlane.f32.xlu0 %v657
        %v847 = vpop.xlane.xlu0 %846
        %848 = vadd.xlane.f32.xlu0 %v658
        %v849 = vpop.xlane.xlu0 %848
        %850 = vadd.xlane.f32.xlu0 %v659
        %v851 = vpop.xlane.xlu0 %850
        %852 = vadd.xlane.f32.xlu0 %v660
        %v853 = vpop.xlane.xlu0 %852
        %854 = vadd.xlane.f32.xlu0 %v661
        %v855 = vpop.xlane.xlu0 %854
        %856 = vadd.xlane.f32.xlu0 %v662
        %v857 = vpop.xlane.xlu0 %856
        %858 = vadd.xlane.f32.xlu0 %v663
        %v859 = vpop.xlane.xlu0 %858
        %860 = vadd.xlane.f32.xlu0 %v664
        %v861 = vpop.xlane.xlu0 %860
        %862 = vadd.xlane.f32.xlu0 %v665
        %v863 = vpop.xlane.xlu0 %862
        %864 = vadd.xlane.f32.xlu0 %v666
        %v865 = vpop.xlane.xlu0 %864
        %866 = vadd.xlane.f32.xlu0 %v667
        %v867 = vpop.xlane.xlu0 %866
        %868 = vadd.xlane.f32.xlu0 %v668
        %v869 = vpop.xlane.xlu0 %868
        %870 = vadd.xlane.f32.xlu0 %v669
        %v871 = vpop.xlane.xlu0 %870
        %872 = vadd.xlane.f32.xlu0 %v670
        %v873 = vpop.xlane.xlu0 %872
        %874 = vadd.xlane.f32.xlu0 %v671
        %v875 = vpop.xlane.xlu0 %874
        %876 = vadd.xlane.f32.xlu0 %v672
        %v877 = vpop.xlane.xlu0 %876
        %878 = vadd.xlane.f32.xlu0 %v673
        %v879 = vpop.xlane.xlu0 %878
        %880 = vadd.xlane.f32.xlu0 %v674
        %v881 = vpop.xlane.xlu0 %880
        %882 = vadd.xlane.f32.xlu0 %v675
        %v883 = vpop.xlane.xlu0 %882
        %884 = vadd.xlane.f32.xlu0 %v676
        %v885 = vpop.xlane.xlu0 %884
        %886 = vadd.xlane.f32.xlu0 %v677
        %v887 = vpop.xlane.xlu0 %886
        %888 = vadd.xlane.f32.xlu0 %v678
        %v889 = vpop.xlane.xlu0 %888
        %890 = vadd.xlane.f32.xlu0 %v679
        %v891 = vpop.xlane.xlu0 %890
        %892 = vadd.xlane.f32.xlu0 %v680
        %v893 = vpop.xlane.xlu0 %892
        %894 = vadd.xlane.f32.xlu0 %v681
        %v895 = vpop.xlane.xlu0 %894
        %896 = vadd.xlane.f32.xlu0 %v682
        %v897 = vpop.xlane.xlu0 %896
        %898 = vadd.xlane.f32.xlu0 %v683
        %v899 = vpop.xlane.xlu0 %898
        %900 = vadd.xlane.f32.xlu0 %v684
        %v901 = vpop.xlane.xlu0 %900
        %902 = vadd.xlane.f32.xlu0 %v685
        %v903 = vpop.xlane.xlu0 %902
        %904 = vadd.xlane.f32.xlu0 %v686
        %v905 = vpop.xlane.xlu0 %904
        %906 = vadd.xlane.f32.xlu0 %v687
        %v907 = vpop.xlane.xlu0 %906
        %908 = vadd.xlane.f32.xlu0 %v688
        %v909 = vpop.xlane.xlu0 %908
        %910 = vadd.xlane.f32.xlu0 %v689
        %v911 = vpop.xlane.xlu0 %910
        %912 = vadd.xlane.f32.xlu0 %v690
        %v913 = vpop.xlane.xlu0 %912
        %914 = vadd.xlane.f32.xlu0 %v691
        %v915 = vpop.xlane.xlu0 %914
        %916 = vadd.xlane.f32.xlu0 %v692
        %v917 = vpop.xlane.xlu0 %916
        %918 = vadd.xlane.f32.xlu0 %v693
        %v919 = vpop.xlane.xlu0 %918
        %920 = vadd.xlane.f32.xlu0 %v694
        %v921 = vpop.xlane.xlu0 %920
        %922 = vadd.xlane.f32.xlu0 %v695
        %v923 = vpop.xlane.xlu0 %922
        %924 = vadd.xlane.f32.xlu0 %v696
        %v925 = vpop.xlane.xlu0 %924
        %926 = vadd.xlane.f32.xlu0 %v697
        %v927 = vpop.xlane.xlu0 %926
        %928 = vadd.xlane.f32.xlu0 %v698
        %v929 = vpop.xlane.xlu0 %928
        %930 = vadd.xlane.f32.xlu0 %v699
        %v931 = vpop.xlane.xlu0 %930
        %932 = vadd.xlane.f32.xlu0 %v700
        %v933 = vpop.xlane.xlu0 %932
        %934 = vadd.xlane.f32.xlu0 %v701
        %v935 = vpop.xlane.xlu0 %934
        %936 = vadd.xlane.f32.xlu0 %v702
        %v937 = vpop.xlane.xlu0 %936
        %938 = vadd.xlane.f32.xlu0 %v703
        %v939 = vpop.xlane.xlu0 %938
        %940 = vadd.xlane.f32.xlu0 %v704
        %v941 = vpop.xlane.xlu0 %940
        %942 = vadd.xlane.f32.xlu0 %v705
        %v943 = vpop.xlane.xlu0 %942
        %944 = vadd.xlane.f32.xlu0 %v706
        %v945 = vpop.xlane.xlu0 %944
        %946 = vadd.xlane.f32.xlu0 %v707
        %v947 = vpop.xlane.xlu0 %946
        %948 = vadd.xlane.f32.xlu0 %v708
        %v949 = vpop.xlane.xlu0 %948
        %950 = vadd.xlane.f32.xlu0 %v709
        %v951 = vpop.xlane.xlu0 %950
        %952 = vadd.xlane.f32.xlu0 %v710
        %v953 = vpop.xlane.xlu0 %952
        %954 = vadd.xlane.f32.xlu0 %v711
        %v955 = vpop.xlane.xlu0 %954
        %956 = vadd.xlane.f32.xlu0 %v712
        %v957 = vpop.xlane.xlu0 %956
        %958 = vadd.xlane.f32.xlu0 %v713
        %v959 = vpop.xlane.xlu0 %958
        %960 = vadd.xlane.f32.xlu0 %v714
        %v961 = vpop.xlane.xlu0 %960
        %962 = vadd.xlane.f32.xlu0 %v715
        %v963 = vpop.xlane.xlu0 %962
        %964 = vadd.xlane.f32.xlu0 %v716
        %v965 = vpop.xlane.xlu0 %964
        %966 = vadd.xlane.f32.xlu0 %v717
        %v967 = vpop.xlane.xlu0 %966
        %968 = vadd.xlane.f32.xlu0 %v718
        %v969 = vpop.xlane.xlu0 %968
        %970 = vadd.xlane.f32.xlu0 %v719
        %v971 = vpop.xlane.xlu0 %970
        %972 = vadd.xlane.f32.xlu0 %v720
        %v973 = vpop.xlane.xlu0 %972
        %974 = vadd.xlane.f32.xlu0 %v721
        %v975 = vpop.xlane.xlu0 %974
        %976 = vadd.xlane.f32.xlu0 %v722
        %v977 = vpop.xlane.xlu0 %976
        %978 = vadd.xlane.f32.xlu0 %v723
        %v979 = vpop.xlane.xlu0 %978
        %v980 = vld [vmem:[#allocation2] sm:$0xff]
        %v981 = vld [vmem:[#allocation2 + $0x8] sm:$0xff]
        %v982 = vld [vmem:[#allocation2 + $0x10] sm:$0xff]
        %v983 = vld [vmem:[#allocation2 + $0x18] sm:$0xff]
        %v984 = vld [vmem:[#allocation2 + $0x20] sm:$0xff]
        %v985 = vld [vmem:[#allocation2 + $0x28] sm:$0xff]
        %v986 = vpack.c.bf16 %v727, %v725
        %v987 = vpack.c.bf16 %v731, %v729
        %v988 = vpack.c.bf16 %v735, %v733
        %v989 = vpack.c.bf16 %v739, %v737
        %v990 = vpack.c.bf16 %v743, %v741
        %v991 = vpack.c.bf16 %v747, %v745
        %v992 = vpack.c.bf16 %v751, %v749
        %v993 = vpack.c.bf16 %v755, %v753
        %v994 = vpack.c.bf16 %v759, %v757
        %v995 = vpack.c.bf16 %v763, %v761
        %v996 = vpack.c.bf16 %v767, %v765
        %v997 = vpack.c.bf16 %v771, %v769
        %v998 = vpack.c.bf16 %v775, %v773
        %v999 = vpack.c.bf16 %v779, %v777
        %v1000 = vpack.c.bf16 %v783, %v781
        %v1001 = vpack.c.bf16 %v787, %v785
        %v1002 = vpack.c.bf16 %v791, %v789
        %v1003 = vpack.c.bf16 %v795, %v793
        %v1004 = vpack.c.bf16 %v799, %v797
        %v1005 = vpack.c.bf16 %v803, %v801
        %v1006 = vpack.c.bf16 %v807, %v805
        %v1007 = vpack.c.bf16 %v811, %v809
        %v1008 = vpack.c.bf16 %v815, %v813
        %v1009 = vpack.c.bf16 %v819, %v817
        %v1010 = vpack.c.bf16 %v823, %v821
        %v1011 = vpack.c.bf16 %v827, %v825
        %v1012 = vpack.c.bf16 %v831, %v829
        %v1013 = vpack.c.bf16 %v835, %v833
        %v1014 = vpack.c.bf16 %v839, %v837
        %v1015 = vpack.c.bf16 %v843, %v841
        %v1016 = vpack.c.bf16 %v847, %v845
        %v1017 = vpack.c.bf16 %v851, %v849
        %v1018 = vpack.c.bf16 %v855, %v853
        %v1019 = vpack.c.bf16 %v859, %v857
        %v1020 = vpack.c.bf16 %v863, %v861
        %v1021 = vpack.c.bf16 %v867, %v865
        %v1022 = vpack.c.bf16 %v871, %v869
        %v1023 = vpack.c.bf16 %v875, %v873
        %v1024 = vpack.c.bf16 %v879, %v877
        %v1025 = vpack.c.bf16 %v883, %v881
        %v1026 = vpack.c.bf16 %v887, %v885
        %v1027 = vpack.c.bf16 %v891, %v889
        %v1028 = vpack.c.bf16 %v895, %v893
        %v1029 = vpack.c.bf16 %v899, %v897
        %v1030 = vpack.c.bf16 %v903, %v901
        %v1031 = vpack.c.bf16 %v907, %v905
        %v1032 = vpack.c.bf16 %v911, %v909
        %v1033 = vpack.c.bf16 %v915, %v913
        %v1034 = vpack.c.bf16 %v919, %v917
        %v1035 = vpack.c.bf16 %v923, %v921
        %v1036 = vpack.c.bf16 %v927, %v925
        %v1037 = vpack.c.bf16 %v931, %v929
        %v1038 = vpack.c.bf16 %v935, %v933
        %v1039 = vpack.c.bf16 %v939, %v937
        %v1040 = vpack.c.bf16 %v943, %v941
        %v1041 = vpack.c.bf16 %v947, %v945
        %v1042 = vpack.c.bf16 %v951, %v949
        %v1043 = vpack.c.bf16 %v955, %v953
        %v1044 = vpack.c.bf16 %v959, %v957
        %v1045 = vpack.c.bf16 %v963, %v961
        %v1046 = vpack.c.bf16 %v967, %v965
        %v1047 = vpack.c.bf16 %v971, %v969
        %v1048 = vpack.c.bf16 %v975, %v973
        %v1049 = vpack.c.bf16 %v979, %v977
        %v1050 = vld [vmem:[#allocation3] sm:$0xff]
        %v1051 = vld [vmem:[#allocation3 + $0x8] sm:$0xff]
        %v1052 = vld [vmem:[#allocation3 + $0x10] sm:$0xff]
        %v1053 = vld [vmem:[#allocation3 + $0x18] sm:$0xff]
        %v1054 = vld [vmem:[#allocation3 + $0x20] sm:$0xff]
        %v1055 = vld [vmem:[#allocation3 + $0x28] sm:$0xff]
        %v1056 = vld [vmem:[#allocation3 + $0x30] sm:$0xff]
        %v1057 = vld [vmem:[#allocation3 + $0x38] sm:$0xff]
        %v1058 = vld [vmem:[#allocation3 + $0x40] sm:$0xff]
        %v1059 = vld [vmem:[#allocation3 + $0x48] sm:$0xff]
        %v1060 = vld [vmem:[#allocation3 + $0x50] sm:$0xff]
        %v1061 = vld [vmem:[#allocation3 + $0x58] sm:$0xff]
        %v1062 = vld [vmem:[#allocation3 + $0x60] sm:$0xff]
        %v1063 = vld [vmem:[#allocation3 + $0x68] sm:$0xff]
        %v1064 = vld [vmem:[#allocation3 + $0x70] sm:$0xff]
        %v1065 = vld [vmem:[#allocation3 + $0x78] sm:$0xff]
        %v1066 = vld [vmem:[#allocation3 + $0x80] sm:$0xff]
        %v1067 = vld [vmem:[#allocation3 + $0x88] sm:$0xff]
        %v1068 = vld [vmem:[#allocation3 + $0x90] sm:$0xff]
        %v1069 = vld [vmem:[#allocation3 + $0x98] sm:$0xff]
        %v1070 = vld [vmem:[#allocation3 + $0xa0] sm:$0xff]
        %v1071 = vld [vmem:[#allocation3 + $0xa8] sm:$0xff]
        %v1072 = vld [vmem:[#allocation3 + $0xb0] sm:$0xff]
        %v1073 = vld [vmem:[#allocation3 + $0xb8] sm:$0xff]
        %v1074 = vld [vmem:[#allocation3 + $0xc0] sm:$0xff]
        %v1075 = vld [vmem:[#allocation3 + $0xc8] sm:$0xff]
        %v1076 = vld [vmem:[#allocation3 + $0xd0] sm:$0xff]
        %v1077 = vld [vmem:[#allocation3 + $0xd8] sm:$0xff]
        %v1078 = vld [vmem:[#allocation3 + $0xe0] sm:$0xff]
        %v1079 = vld [vmem:[#allocation3 + $0xe8] sm:$0xff]
        %v1080 = vld [vmem:[#allocation3 + $0xf0] sm:$0xff]
        %v1081 = vld [vmem:[#allocation3 + $0xf8] sm:$0xff]
        %v1082 = vld [vmem:[#allocation3 + $0x100] sm:$0xff]
        %v1083 = vld [vmem:[#allocation3 + $0x108] sm:$0xff]
        %v1084 = vld [vmem:[#allocation3 + $0x110] sm:$0xff]
        %v1085 = vld [vmem:[#allocation3 + $0x118] sm:$0xff]
        %v1086 = vld [vmem:[#allocation3 + $0x120] sm:$0xff]
        %v1087 = vld [vmem:[#allocation3 + $0x128] sm:$0xff]
        %v1088 = vld [vmem:[#allocation3 + $0x130] sm:$0xff]
        %v1089 = vld [vmem:[#allocation3 + $0x138] sm:$0xff]
        %v1090 = vld [vmem:[#allocation3 + $0x140] sm:$0xff]
        %v1091 = vld [vmem:[#allocation3 + $0x148] sm:$0xff]
        %v1092 = vld [vmem:[#allocation3 + $0x150] sm:$0xff]
        %v1093 = vld [vmem:[#allocation3 + $0x158] sm:$0xff]
        %v1094 = vld [vmem:[#allocation3 + $0x160] sm:$0xff]
        %v1095 = vld [vmem:[#allocation3 + $0x168] sm:$0xff]
        %v1096 = vld [vmem:[#allocation3 + $0x170] sm:$0xff]
        %v1097 = vld [vmem:[#allocation3 + $0x178] sm:$0xff]
        %v1162 = vunpack.c.l.b16 %v986
        %v1163 = vunpack.c.h.b16 %v986
        %v1164 = vunpack.c.l.b16 %v987
        %v1165 = vunpack.c.h.b16 %v987
        %v1166 = vunpack.c.l.b16 %v988
        %v1167 = vunpack.c.h.b16 %v988
        %v1168 = vunpack.c.l.b16 %v989
        %v1169 = vunpack.c.h.b16 %v989
        %v1170 = vunpack.c.l.b16 %v990
        %v1171 = vunpack.c.h.b16 %v990
        %v1172 = vunpack.c.l.b16 %v991
        %v1173 = vunpack.c.h.b16 %v991
        %v1174 = vunpack.c.l.b16 %v992
        %v1175 = vunpack.c.h.b16 %v992
        %v1176 = vunpack.c.l.b16 %v993
        %v1177 = vunpack.c.h.b16 %v993
        %v1178 = vunpack.c.l.b16 %v994
        %v1179 = vunpack.c.h.b16 %v994
        %v1180 = vunpack.c.l.b16 %v995
        %v1181 = vunpack.c.h.b16 %v995
        %v1182 = vunpack.c.l.b16 %v996
        %v1183 = vunpack.c.h.b16 %v996
        %v1184 = vunpack.c.l.b16 %v997
        %v1185 = vunpack.c.h.b16 %v997
        %v1186 = vunpack.c.l.b16 %v998
        %v1187 = vunpack.c.h.b16 %v998
        %v1188 = vunpack.c.l.b16 %v999
        %v1189 = vunpack.c.h.b16 %v999
        %v1190 = vunpack.c.l.b16 %v1000
        %v1191 = vunpack.c.h.b16 %v1000
        %v1192 = vunpack.c.l.b16 %v1001
        %v1193 = vunpack.c.h.b16 %v1001
        %v1194 = vunpack.c.l.b16 %v1002
        %v1195 = vunpack.c.h.b16 %v1002
        %v1196 = vunpack.c.l.b16 %v1003
        %v1197 = vunpack.c.h.b16 %v1003
        %v1198 = vunpack.c.l.b16 %v1004
        %v1199 = vunpack.c.h.b16 %v1004
        %v1200 = vunpack.c.l.b16 %v1005
        %v1201 = vunpack.c.h.b16 %v1005
        %v1202 = vunpack.c.l.b16 %v1006
        %v1203 = vunpack.c.h.b16 %v1006
        %v1204 = vunpack.c.l.b16 %v1007
        %v1205 = vunpack.c.h.b16 %v1007
        %v1206 = vunpack.c.l.b16 %v1008
        %v1207 = vunpack.c.h.b16 %v1008
        %v1208 = vunpack.c.l.b16 %v1009
        %v1209 = vunpack.c.h.b16 %v1009
        %v1210 = vunpack.c.l.b16 %v1010
        %v1211 = vunpack.c.h.b16 %v1010
        %v1212 = vunpack.c.l.b16 %v1011
        %v1213 = vunpack.c.h.b16 %v1011
        %v1214 = vunpack.c.l.b16 %v1012
        %v1215 = vunpack.c.h.b16 %v1012
        %v1216 = vunpack.c.l.b16 %v1013
        %v1217 = vunpack.c.h.b16 %v1013
        %v1218 = vunpack.c.l.b16 %v1014
        %v1219 = vunpack.c.h.b16 %v1014
        %v1220 = vunpack.c.l.b16 %v1015
        %v1221 = vunpack.c.h.b16 %v1015
        %v1222 = vunpack.c.l.b16 %v1016
        %v1223 = vunpack.c.h.b16 %v1016
        %v1224 = vunpack.c.l.b16 %v1017
        %v1225 = vunpack.c.h.b16 %v1017
        %v1226 = vunpack.c.l.b16 %v1018
        %v1227 = vunpack.c.h.b16 %v1018
        %v1228 = vunpack.c.l.b16 %v1019
        %v1229 = vunpack.c.h.b16 %v1019
        %v1230 = vunpack.c.l.b16 %v1020
        %v1231 = vunpack.c.h.b16 %v1020
        %v1232 = vunpack.c.l.b16 %v1021
        %v1233 = vunpack.c.h.b16 %v1021
        %v1234 = vunpack.c.l.b16 %v1022
        %v1235 = vunpack.c.h.b16 %v1022
        %v1236 = vunpack.c.l.b16 %v1023
        %v1237 = vunpack.c.h.b16 %v1023
        %v1238 = vunpack.c.l.b16 %v1024
        %v1239 = vunpack.c.h.b16 %v1024
        %v1240 = vunpack.c.l.b16 %v1025
        %v1241 = vunpack.c.h.b16 %v1025
        %v1242 = vunpack.c.l.b16 %v1026
        %v1243 = vunpack.c.h.b16 %v1026
        %v1244 = vunpack.c.l.b16 %v1027
        %v1245 = vunpack.c.h.b16 %v1027
        %v1246 = vunpack.c.l.b16 %v1028
        %v1247 = vunpack.c.h.b16 %v1028
        %v1248 = vunpack.c.l.b16 %v1029
        %v1249 = vunpack.c.h.b16 %v1029
        %v1250 = vunpack.c.l.b16 %v1030
        %v1251 = vunpack.c.h.b16 %v1030
        %v1252 = vunpack.c.l.b16 %v1031
        %v1253 = vunpack.c.h.b16 %v1031
        %v1254 = vunpack.c.l.b16 %v1032
        %v1255 = vunpack.c.h.b16 %v1032
        %v1256 = vunpack.c.l.b16 %v1033
        %v1257 = vunpack.c.h.b16 %v1033
        %v1258 = vunpack.c.l.b16 %v1034
        %v1259 = vunpack.c.h.b16 %v1034
        %v1260 = vunpack.c.l.b16 %v1035
        %v1261 = vunpack.c.h.b16 %v1035
        %v1262 = vunpack.c.l.b16 %v1036
        %v1263 = vunpack.c.h.b16 %v1036
        %v1264 = vunpack.c.l.b16 %v1037
        %v1265 = vunpack.c.h.b16 %v1037
        %v1266 = vunpack.c.l.b16 %v1038
        %v1267 = vunpack.c.h.b16 %v1038
        %v1268 = vunpack.c.l.b16 %v1039
        %v1269 = vunpack.c.h.b16 %v1039
        %v1270 = vunpack.c.l.b16 %v1040
        %v1271 = vunpack.c.h.b16 %v1040
        %v1272 = vunpack.c.l.b16 %v1041
        %v1273 = vunpack.c.h.b16 %v1041
        %v1274 = vunpack.c.l.b16 %v1042
        %v1275 = vunpack.c.h.b16 %v1042
        %v1276 = vunpack.c.l.b16 %v1043
        %v1277 = vunpack.c.h.b16 %v1043
        %v1278 = vunpack.c.l.b16 %v1044
        %v1279 = vunpack.c.h.b16 %v1044
        %v1280 = vunpack.c.l.b16 %v1045
        %v1281 = vunpack.c.h.b16 %v1045
        %v1282 = vunpack.c.l.b16 %v1046
        %v1283 = vunpack.c.h.b16 %v1046
        %v1284 = vunpack.c.l.b16 %v1047
        %v1285 = vunpack.c.h.b16 %v1047
        %v1286 = vunpack.c.l.b16 %v1048
        %v1287 = vunpack.c.h.b16 %v1048
        %v1288 = vunpack.c.l.b16 %v1049
        %v1289 = vunpack.c.h.b16 %v1049
        %v1290 = vlaneseq
        %v1291 = vand.u32 %v1290, 127
        %v1292 = vperm.slane %v1162, %v1291
        %v1293 = vadd.s32 %v1291, 4294967288
        %v1294 = vperm.slane %v1163, %v1293
        %vm1295 = vcmask 130112
        %v1296 = vsel %vm1295, %v1294, %v1292
        %v1297 = vadd.s32 %v1291, 4294967280
        %v1298 = vperm.slane %v1164, %v1297
        %vm1299 = vcmask 195712
        %v1300 = vsel %vm1299, %v1298, %v1296
        %v1301 = vadd.s32 %v1291, 4294967272
        %v1302 = vperm.slane %v1165, %v1301
        %vm1303 = vcmask 261312
        %v1304 = vsel %vm1303, %v1302, %v1300
        %v1305 = vadd.s32 %v1291, 4294967264
        %v1306 = vperm.slane %v1166, %v1305
        %vm1307 = vcmask 326912
        %v1308 = vsel %vm1307, %v1306, %v1304
        %v1309 = vadd.s32 %v1291, 4294967256
        %v1310 = vperm.slane %v1167, %v1309
        %vm1311 = vcmask 392512
        %v1312 = vsel %vm1311, %v1310, %v1308
        %v1313 = vadd.s32 %v1291, 4294967248
        %v1314 = vperm.slane %v1168, %v1313
        %vm1315 = vcmask 458112
        %v1316 = vsel %vm1315, %v1314, %v1312
        %v1317 = vadd.s32 %v1291, 4294967240
        %v1318 = vperm.slane %v1169, %v1317
        %vm1319 = vcmask 523712
        %v1320 = vsel %vm1319, %v1318, %v1316
        %v1321 = vadd.s32 %v1291, 4294967232
        %v1322 = vperm.slane %v1170, %v1321
        %vm1323 = vcmask 589312
        %v1324 = vsel %vm1323, %v1322, %v1320
        %v1325 = vadd.s32 %v1291, 4294967224
        %v1326 = vperm.slane %v1171, %v1325
        %vm1327 = vcmask 654912
        %v1328 = vsel %vm1327, %v1326, %v1324
        %v1329 = vadd.s32 %v1291, 4294967216
        %v1330 = vperm.slane %v1172, %v1329
        %vm1331 = vcmask 720512
        %v1332 = vsel %vm1331, %v1330, %v1328
        %v1333 = vadd.s32 %v1291, 4294967208
        %v1334 = vperm.slane %v1173, %v1333
        %vm1335 = vcmask 786112
        %v1336 = vsel %vm1335, %v1334, %v1332
        %v1337 = vadd.s32 %v1291, 4294967200
        %v1338 = vperm.slane %v1174, %v1337
        %vm1339 = vcmask 851712
        %v1340 = vsel %vm1339, %v1338, %v1336
        %v1341 = vadd.s32 %v1291, 4294967192
        %v1342 = vperm.slane %v1175, %v1341
        %vm1343 = vcmask 917312
        %v1344 = vsel %vm1343, %v1342, %v1340
        %v1345 = vadd.s32 %v1291, 4294967184
        %v1346 = vperm.slane %v1176, %v1345
        %vm1347 = vcmask 982912
        %v1348 = vsel %vm1347, %v1346, %v1344
        %v1349 = vadd.s32 %v1291, 4294967176
        %v1350 = vperm.slane %v1177, %v1349
        %vm1351 = vcmask 1048512
        %v1352 = vsel %vm1351, %v1350, %v1348
        %v1353 = vperm.slane %v1178, %v1291
        %v1354 = vperm.slane %v1179, %v1293
        %v1355 = vsel %vm1295, %v1354, %v1353
        %v1356 = vperm.slane %v1180, %v1297
        %v1357 = vsel %vm1299, %v1356, %v1355
        %v1358 = vperm.slane %v1181, %v1301
        %v1359 = vsel %vm1303, %v1358, %v1357
        %v1360 = vperm.slane %v1182, %v1305
        %v1361 = vsel %vm1307, %v1360, %v1359
        %v1362 = vperm.slane %v1183, %v1309
        %v1363 = vsel %vm1311, %v1362, %v1361
        %v1364 = vperm.slane %v1184, %v1313
        %v1365 = vsel %vm1315, %v1364, %v1363
        %v1366 = vperm.slane %v1185, %v1317
        %v1367 = vsel %vm1319, %v1366, %v1365
        %v1368 = vperm.slane %v1186, %v1321
        %v1369 = vsel %vm1323, %v1368, %v1367
        %v1370 = vperm.slane %v1187, %v1325
        %v1371 = vsel %vm1327, %v1370, %v1369
        %v1372 = vperm.slane %v1188, %v1329
        %v1373 = vsel %vm1331, %v1372, %v1371
        %v1374 = vperm.slane %v1189, %v1333
        %v1375 = vsel %vm1335, %v1374, %v1373
        %v1376 = vperm.slane %v1190, %v1337
        %v1377 = vsel %vm1339, %v1376, %v1375
        %v1378 = vperm.slane %v1191, %v1341
        %v1379 = vsel %vm1343, %v1378, %v1377
        %v1380 = vperm.slane %v1192, %v1345
        %v1381 = vsel %vm1347, %v1380, %v1379
        %v1382 = vperm.slane %v1193, %v1349
        %v1383 = vsel %vm1351, %v1382, %v1381
        %v1384 = vperm.slane %v1194, %v1291
        %v1385 = vperm.slane %v1195, %v1293
        %v1386 = vsel %vm1295, %v1385, %v1384
        %v1387 = vperm.slane %v1196, %v1297
        %v1388 = vsel %vm1299, %v1387, %v1386
        %v1389 = vperm.slane %v1197, %v1301
        %v1390 = vsel %vm1303, %v1389, %v1388
        %v1391 = vperm.slane %v1198, %v1305
        %v1392 = vsel %vm1307, %v1391, %v1390
        %v1393 = vperm.slane %v1199, %v1309
        %v1394 = vsel %vm1311, %v1393, %v1392
        %v1395 = vperm.slane %v1200, %v1313
        %v1396 = vsel %vm1315, %v1395, %v1394
        %v1397 = vperm.slane %v1201, %v1317
        %v1398 = vsel %vm1319, %v1397, %v1396
        %v1399 = vperm.slane %v1202, %v1321
        %v1400 = vsel %vm1323, %v1399, %v1398
        %v1401 = vperm.slane %v1203, %v1325
        %v1402 = vsel %vm1327, %v1401, %v1400
        %v1403 = vperm.slane %v1204, %v1329
        %v1404 = vsel %vm1331, %v1403, %v1402
        %v1405 = vperm.slane %v1205, %v1333
        %v1406 = vsel %vm1335, %v1405, %v1404
        %v1407 = vperm.slane %v1206, %v1337
        %v1408 = vsel %vm1339, %v1407, %v1406
        %v1409 = vperm.slane %v1207, %v1341
        %v1410 = vsel %vm1343, %v1409, %v1408
        %v1411 = vperm.slane %v1208, %v1345
        %v1412 = vsel %vm1347, %v1411, %v1410
        %v1413 = vperm.slane %v1209, %v1349
        %v1414 = vsel %vm1351, %v1413, %v1412
        %v1415 = vperm.slane %v1210, %v1291
        %v1416 = vperm.slane %v1211, %v1293
        %v1417 = vsel %vm1295, %v1416, %v1415
        %v1418 = vperm.slane %v1212, %v1297
        %v1419 = vsel %vm1299, %v1418, %v1417
        %v1420 = vperm.slane %v1213, %v1301
        %v1421 = vsel %vm1303, %v1420, %v1419
        %v1422 = vperm.slane %v1214, %v1305
        %v1423 = vsel %vm1307, %v1422, %v1421
        %v1424 = vperm.slane %v1215, %v1309
        %v1425 = vsel %vm1311, %v1424, %v1423
        %v1426 = vperm.slane %v1216, %v1313
        %v1427 = vsel %vm1315, %v1426, %v1425
        %v1428 = vperm.slane %v1217, %v1317
        %v1429 = vsel %vm1319, %v1428, %v1427
        %v1430 = vperm.slane %v1218, %v1321
        %v1431 = vsel %vm1323, %v1430, %v1429
        %v1432 = vperm.slane %v1219, %v1325
        %v1433 = vsel %vm1327, %v1432, %v1431
        %v1434 = vperm.slane %v1220, %v1329
        %v1435 = vsel %vm1331, %v1434, %v1433
        %v1436 = vperm.slane %v1221, %v1333
        %v1437 = vsel %vm1335, %v1436, %v1435
        %v1438 = vperm.slane %v1222, %v1337
        %v1439 = vsel %vm1339, %v1438, %v1437
        %v1440 = vperm.slane %v1223, %v1341
        %v1441 = vsel %vm1343, %v1440, %v1439
        %v1442 = vperm.slane %v1224, %v1345
        %v1443 = vsel %vm1347, %v1442, %v1441
        %v1444 = vperm.slane %v1225, %v1349
        %v1445 = vsel %vm1351, %v1444, %v1443
        %v1446 = vperm.slane %v1226, %v1291
        %v1447 = vperm.slane %v1227, %v1293
        %v1448 = vsel %vm1295, %v1447, %v1446
        %v1449 = vperm.slane %v1228, %v1297
        %v1450 = vsel %vm1299, %v1449, %v1448
        %v1451 = vperm.slane %v1229, %v1301
        %v1452 = vsel %vm1303, %v1451, %v1450
        %v1453 = vperm.slane %v1230, %v1305
        %v1454 = vsel %vm1307, %v1453, %v1452
        %v1455 = vperm.slane %v1231, %v1309
        %v1456 = vsel %vm1311, %v1455, %v1454
        %v1457 = vperm.slane %v1232, %v1313
        %v1458 = vsel %vm1315, %v1457, %v1456
        %v1459 = vperm.slane %v1233, %v1317
        %v1460 = vsel %vm1319, %v1459, %v1458
        %v1461 = vperm.slane %v1234, %v1321
        %v1462 = vsel %vm1323, %v1461, %v1460
        %v1463 = vperm.slane %v1235, %v1325
        %v1464 = vsel %vm1327, %v1463, %v1462
        %v1465 = vperm.slane %v1236, %v1329
        %v1466 = vsel %vm1331, %v1465, %v1464
        %v1467 = vperm.slane %v1237, %v1333
        %v1468 = vsel %vm1335, %v1467, %v1466
        %v1469 = vperm.slane %v1238, %v1337
        %v1470 = vsel %vm1339, %v1469, %v1468
        %v1471 = vperm.slane %v1239, %v1341
        %v1472 = vsel %vm1343, %v1471, %v1470
        %v1473 = vperm.slane %v1240, %v1345
        %v1474 = vsel %vm1347, %v1473, %v1472
        %v1475 = vperm.slane %v1241, %v1349
        %v1476 = vsel %vm1351, %v1475, %v1474
        %v1477 = vperm.slane %v1242, %v1291
        %v1478 = vperm.slane %v1243, %v1293
        %v1479 = vsel %vm1295, %v1478, %v1477
        %v1480 = vperm.slane %v1244, %v1297
        %v1481 = vsel %vm1299, %v1480, %v1479
        %v1482 = vperm.slane %v1245, %v1301
        %v1483 = vsel %vm1303, %v1482, %v1481
        %v1484 = vperm.slane %v1246, %v1305
        %v1485 = vsel %vm1307, %v1484, %v1483
        %v1486 = vperm.slane %v1247, %v1309
        %v1487 = vsel %vm1311, %v1486, %v1485
        %v1488 = vperm.slane %v1248, %v1313
        %v1489 = vsel %vm1315, %v1488, %v1487
        %v1490 = vperm.slane %v1249, %v1317
        %v1491 = vsel %vm1319, %v1490, %v1489
        %v1492 = vperm.slane %v1250, %v1321
        %v1493 = vsel %vm1323, %v1492, %v1491
        %v1494 = vperm.slane %v1251, %v1325
        %v1495 = vsel %vm1327, %v1494, %v1493
        %v1496 = vperm.slane %v1252, %v1329
        %v1497 = vsel %vm1331, %v1496, %v1495
        %v1498 = vperm.slane %v1253, %v1333
        %v1499 = vsel %vm1335, %v1498, %v1497
        %v1500 = vperm.slane %v1254, %v1337
        %v1501 = vsel %vm1339, %v1500, %v1499
        %v1502 = vperm.slane %v1255, %v1341
        %v1503 = vsel %vm1343, %v1502, %v1501
        %v1504 = vperm.slane %v1256, %v1345
        %v1505 = vsel %vm1347, %v1504, %v1503
        %v1506 = vperm.slane %v1257, %v1349
        %v1507 = vsel %vm1351, %v1506, %v1505
        %v1508 = vperm.slane %v1258, %v1291
        %v1509 = vperm.slane %v1259, %v1293
        %v1510 = vsel %vm1295, %v1509, %v1508
        %v1511 = vperm.slane %v1260, %v1297
        %v1512 = vsel %vm1299, %v1511, %v1510
        %v1513 = vperm.slane %v1261, %v1301
        %v1514 = vsel %vm1303, %v1513, %v1512
        %v1515 = vperm.slane %v1262, %v1305
        %v1516 = vsel %vm1307, %v1515, %v1514
        %v1517 = vperm.slane %v1263, %v1309
        %v1518 = vsel %vm1311, %v1517, %v1516
        %v1519 = vperm.slane %v1264, %v1313
        %v1520 = vsel %vm1315, %v1519, %v1518
        %v1521 = vperm.slane %v1265, %v1317
        %v1522 = vsel %vm1319, %v1521, %v1520
        %v1523 = vperm.slane %v1266, %v1321
        %v1524 = vsel %vm1323, %v1523, %v1522
        %v1525 = vperm.slane %v1267, %v1325
        %v1526 = vsel %vm1327, %v1525, %v1524
        %v1527 = vperm.slane %v1268, %v1329
        %v1528 = vsel %vm1331, %v1527, %v1526
        %v1529 = vperm.slane %v1269, %v1333
        %v1530 = vsel %vm1335, %v1529, %v1528
        %v1531 = vperm.slane %v1270, %v1337
        %v1532 = vsel %vm1339, %v1531, %v1530
        %v1533 = vperm.slane %v1271, %v1341
        %v1534 = vsel %vm1343, %v1533, %v1532
        %v1535 = vperm.slane %v1272, %v1345
        %v1536 = vsel %vm1347, %v1535, %v1534
        %v1537 = vperm.slane %v1273, %v1349
        %v1538 = vsel %vm1351, %v1537, %v1536
        %v1539 = vperm.slane %v1274, %v1291
        %v1540 = vperm.slane %v1275, %v1293
        %v1541 = vsel %vm1295, %v1540, %v1539
        %v1542 = vperm.slane %v1276, %v1297
        %v1543 = vsel %vm1299, %v1542, %v1541
        %v1544 = vperm.slane %v1277, %v1301
        %v1545 = vsel %vm1303, %v1544, %v1543
        %v1546 = vperm.slane %v1278, %v1305
        %v1547 = vsel %vm1307, %v1546, %v1545
        %v1548 = vperm.slane %v1279, %v1309
        %v1549 = vsel %vm1311, %v1548, %v1547
        %v1550 = vperm.slane %v1280, %v1313
        %v1551 = vsel %vm1315, %v1550, %v1549
        %v1552 = vperm.slane %v1281, %v1317
        %v1553 = vsel %vm1319, %v1552, %v1551
        %v1554 = vperm.slane %v1282, %v1321
        %v1555 = vsel %vm1323, %v1554, %v1553
        %v1556 = vperm.slane %v1283, %v1325
        %v1557 = vsel %vm1327, %v1556, %v1555
        %v1558 = vperm.slane %v1284, %v1329
        %v1559 = vsel %vm1331, %v1558, %v1557
        %v1560 = vperm.slane %v1285, %v1333
        %v1561 = vsel %vm1335, %v1560, %v1559
        %v1562 = vperm.slane %v1286, %v1337
        %v1563 = vsel %vm1339, %v1562, %v1561
        %v1564 = vperm.slane %v1287, %v1341
        %v1565 = vsel %vm1343, %v1564, %v1563
        %v1566 = vperm.slane %v1288, %v1345
        %v1567 = vsel %vm1347, %v1566, %v1565
        %v1568 = vperm.slane %v1289, %v1349
        %v1569 = vsel %vm1351, %v1568, %v1567
        %vm1570 = vcmask 1041409
        %v1571 = vsel %vm1570, %v1383, %v1352
        %vm1572 = vcmask 1042434
        %v1573 = vsel %vm1572, %v1414, %v1571
        %vm1574 = vcmask 1043459
        %v1575 = vsel %vm1574, %v1445, %v1573
        %vm1576 = vcmask 1044484
        %v1577 = vsel %vm1576, %v1476, %v1575
        %vm1578 = vcmask 1045509
        %v1579 = vsel %vm1578, %v1507, %v1577
        %vm1580 = vcmask 1046534
        %v1581 = vsel %vm1580, %v1538, %v1579
        %vm1582 = vcmask 1047559
        %v1583 = vsel %vm1582, %v1569, %v1581
        %v1584 = vpack.c.b16 %v1583, %v1583
        %v1634 = vunpack.c.l.b16 %v1050
        %v1635 = vunpack.c.h.b16 %v1050
        %v1636 = vunpack.c.l.b16 %v1051
        %v1637 = vunpack.c.h.b16 %v1051
        %v1638 = vunpack.c.l.b16 %v1052
        %v1639 = vunpack.c.h.b16 %v1052
        %v1640 = vunpack.c.l.b16 %v1053
        %v1641 = vunpack.c.h.b16 %v1053
        %v1642 = vunpack.c.l.b16 %v1054
        %v1643 = vunpack.c.h.b16 %v1054
        %v1644 = vunpack.c.l.b16 %v1055
        %v1645 = vunpack.c.h.b16 %v1055
        %v1646 = vunpack.c.l.b16 %v1056
        %v1647 = vunpack.c.h.b16 %v1056
        %v1648 = vunpack.c.l.b16 %v1057
        %v1649 = vunpack.c.h.b16 %v1057
        %v1650 = vunpack.c.l.b16 %v1058
        %v1651 = vunpack.c.h.b16 %v1058
        %v1652 = vunpack.c.l.b16 %v1059
        %v1653 = vunpack.c.h.b16 %v1059
        %v1654 = vunpack.c.l.b16 %v1060
        %v1655 = vunpack.c.h.b16 %v1060
        %v1656 = vunpack.c.l.b16 %v1061
        %v1657 = vunpack.c.h.b16 %v1061
        %v1658 = vunpack.c.l.b16 %v1062
        %v1659 = vunpack.c.h.b16 %v1062
        %v1660 = vunpack.c.l.b16 %v1063
        %v1661 = vunpack.c.h.b16 %v1063
        %v1662 = vunpack.c.l.b16 %v1064
        %v1663 = vunpack.c.h.b16 %v1064
        %v1664 = vunpack.c.l.b16 %v1065
        %v1665 = vunpack.c.h.b16 %v1065
        %v1666 = vunpack.c.l.b16 %v1066
        %v1667 = vunpack.c.h.b16 %v1066
        %v1668 = vunpack.c.l.b16 %v1067
        %v1669 = vunpack.c.h.b16 %v1067
        %v1670 = vunpack.c.l.b16 %v1068
        %v1671 = vunpack.c.h.b16 %v1068
        %v1672 = vunpack.c.l.b16 %v1069
        %v1673 = vunpack.c.h.b16 %v1069
        %v1674 = vunpack.c.l.b16 %v1070
        %v1675 = vunpack.c.h.b16 %v1070
        %v1676 = vunpack.c.l.b16 %v1071
        %v1677 = vunpack.c.h.b16 %v1071
        %v1678 = vunpack.c.l.b16 %v1072
        %v1679 = vunpack.c.h.b16 %v1072
        %v1680 = vunpack.c.l.b16 %v1073
        %v1681 = vunpack.c.h.b16 %v1073
        %v1682 = vunpack.c.l.b16 %v1074
        %v1683 = vunpack.c.h.b16 %v1074
        %v1684 = vunpack.c.l.b16 %v1075
        %v1685 = vunpack.c.h.b16 %v1075
        %v1686 = vunpack.c.l.b16 %v1076
        %v1687 = vunpack.c.h.b16 %v1076
        %v1688 = vunpack.c.l.b16 %v1077
        %v1689 = vunpack.c.h.b16 %v1077
        %v1690 = vunpack.c.l.b16 %v1078
        %v1691 = vunpack.c.h.b16 %v1078
        %v1692 = vunpack.c.l.b16 %v1079
        %v1693 = vunpack.c.h.b16 %v1079
        %v1694 = vunpack.c.l.b16 %v1080
        %v1695 = vunpack.c.h.b16 %v1080
        %v1696 = vunpack.c.l.b16 %v1081
        %v1697 = vunpack.c.h.b16 %v1081
        %v1698 = vunpack.c.l.b16 %v1082
        %v1699 = vunpack.c.h.b16 %v1082
        %v1700 = vunpack.c.l.b16 %v1083
        %v1701 = vunpack.c.h.b16 %v1083
        %v1702 = vunpack.c.l.b16 %v1084
        %v1703 = vunpack.c.h.b16 %v1084
        %v1704 = vunpack.c.l.b16 %v1085
        %v1705 = vunpack.c.h.b16 %v1085
        %v1706 = vunpack.c.l.b16 %v1086
        %v1707 = vunpack.c.h.b16 %v1086
        %v1708 = vunpack.c.l.b16 %v1087
        %v1709 = vunpack.c.h.b16 %v1087
        %v1710 = vunpack.c.l.b16 %v1088
        %v1711 = vunpack.c.h.b16 %v1088
        %v1712 = vunpack.c.l.b16 %v1089
        %v1713 = vunpack.c.h.b16 %v1089
        %v1714 = vunpack.c.l.b16 %v1090
        %v1715 = vunpack.c.h.b16 %v1090
        %v1716 = vunpack.c.l.b16 %v1091
        %v1717 = vunpack.c.h.b16 %v1091
        %v1718 = vunpack.c.l.b16 %v1092
        %v1719 = vunpack.c.h.b16 %v1092
        %v1720 = vunpack.c.l.b16 %v1093
        %v1721 = vunpack.c.h.b16 %v1093
        %v1722 = vunpack.c.l.b16 %v1094
        %v1723 = vunpack.c.h.b16 %v1094
        %v1724 = vunpack.c.l.b16 %v1095
        %v1725 = vunpack.c.h.b16 %v1095
        %v1726 = vunpack.c.l.b16 %v1096
        %v1727 = vunpack.c.h.b16 %v1096
        %v1728 = vunpack.c.l.b16 %v1097
        %v1729 = vunpack.c.h.b16 %v1097
        %v1730 = vpack.c.b16 %v1640, %v1634
        %v1731 = vpack.c.b16 %v1641, %v1635
        %v1732 = vpack.c.b16 %v1642, %v1636
        %v1733 = vpack.c.b16 %v1643, %v1637
        %v1734 = vpack.c.b16 %v1644, %v1638
        %v1735 = vpack.c.b16 %v1645, %v1639
        %v1736 = vpack.c.b16 %v1652, %v1646
        %v1737 = vpack.c.b16 %v1653, %v1647
        %v1738 = vpack.c.b16 %v1654, %v1648
        %v1739 = vpack.c.b16 %v1655, %v1649
        %v1740 = vpack.c.b16 %v1656, %v1650
        %v1741 = vpack.c.b16 %v1657, %v1651
        %v1742 = vpack.c.b16 %v1664, %v1658
        %v1743 = vpack.c.b16 %v1665, %v1659
        %v1744 = vpack.c.b16 %v1666, %v1660
        %v1745 = vpack.c.b16 %v1667, %v1661
        %v1746 = vpack.c.b16 %v1668, %v1662
        %v1747 = vpack.c.b16 %v1669, %v1663
        %v1748 = vpack.c.b16 %v1676, %v1670
        %v1749 = vpack.c.b16 %v1677, %v1671
        %v1750 = vpack.c.b16 %v1678, %v1672
        %v1751 = vpack.c.b16 %v1679, %v1673
        %v1752 = vpack.c.b16 %v1680, %v1674
        %v1753 = vpack.c.b16 %v1681, %v1675
        %v1754 = vpack.c.b16 %v1688, %v1682
        %v1755 = vpack.c.b16 %v1689, %v1683
        %v1756 = vpack.c.b16 %v1690, %v1684
        %v1757 = vpack.c.b16 %v1691, %v1685
        %v1758 = vpack.c.b16 %v1692, %v1686
        %v1759 = vpack.c.b16 %v1693, %v1687
        %v1760 = vpack.c.b16 %v1700, %v1694
        %v1761 = vpack.c.b16 %v1701, %v1695
        %v1762 = vpack.c.b16 %v1702, %v1696
        %v1763 = vpack.c.b16 %v1703, %v1697
        %v1764 = vpack.c.b16 %v1704, %v1698
        %v1765 = vpack.c.b16 %v1705, %v1699
        %v1766 = vpack.c.b16 %v1712, %v1706
        %v1767 = vpack.c.b16 %v1713, %v1707
        %v1768 = vpack.c.b16 %v1714, %v1708
        %v1769 = vpack.c.b16 %v1715, %v1709
        %v1770 = vpack.c.b16 %v1716, %v1710
        %v1771 = vpack.c.b16 %v1717, %v1711
        %v1772 = vpack.c.b16 %v1724, %v1718
        %v1773 = vpack.c.b16 %v1725, %v1719
        %v1774 = vpack.c.b16 %v1726, %v1720
        %v1775 = vpack.c.b16 %v1727, %v1721
        %v1776 = vpack.c.b16 %v1728, %v1722
        %v1777 = vpack.c.b16 %v1729, %v1723
        %1826 = vmatpush.bf16.msra.mxu0 %v1772
        %1827 = vmatpush.bf16.msra.mxu0 %v1766
        %1828 = vmatpush.bf16.msra.mxu0 %v1760
        %1829 = vmatpush.bf16.msra.mxu0 %v1754
        %1830 = vmatpush.bf16.msra.mxu0 %v1748
        %1831 = vmatpush.bf16.msra.mxu0 %v1742
        %1832 = vmatpush.bf16.msra.mxu0 %v1736
        %1833 = vmatpush.bf16.msra.mxu0 %v1730
        %1834 = vmatmul.bf16.gmra.mxu0 %v1584
        %v1835 = vpop.f32.mrf.mxu0
        %v1836 = vadd.f32 0.0, %v1835
        %v1837 = vpop.f32.mrf.mxu0
        %1838 = vdwg.mxu0
        %1839 = vmatpush.bf16.msra.mxu0 %v1773
        %1840 = vmatpush.bf16.msra.mxu0 %v1767
        %1841 = vmatpush.bf16.msra.mxu0 %v1761
        %1842 = vmatpush.bf16.msra.mxu0 %v1755
        %1843 = vmatpush.bf16.msra.mxu0 %v1749
        %1844 = vmatpush.bf16.msra.mxu0 %v1743
        %1845 = vmatpush.bf16.msra.mxu0 %v1737
        %1846 = vmatpush.bf16.msra.mxu0 %v1731
        %1847 = vmatmul.bf16.gmra.mxu0 %v1584
        %v1848 = vpop.f32.mrf.mxu0
        %v1849 = vadd.f32 0.0, %v1848
        %v1850 = vpop.f32.mrf.mxu0
        %1851 = vdwg.mxu0
        %1852 = vmatpush.bf16.msra.mxu0 %v1774
        %1853 = vmatpush.bf16.msra.mxu0 %v1768
        %1854 = vmatpush.bf16.msra.mxu0 %v1762
        %1855 = vmatpush.bf16.msra.mxu0 %v1756
        %1856 = vmatpush.bf16.msra.mxu0 %v1750
        %1857 = vmatpush.bf16.msra.mxu0 %v1744
        %1858 = vmatpush.bf16.msra.mxu0 %v1738
        %1859 = vmatpush.bf16.msra.mxu0 %v1732
        %1860 = vmatmul.bf16.gmra.mxu0 %v1584
        %v1861 = vpop.f32.mrf.mxu0
        %v1862 = vadd.f32 0.0, %v1861
        %v1863 = vpop.f32.mrf.mxu0
        %1864 = vdwg.mxu0
        %1865 = vmatpush.bf16.msra.mxu0 %v1775
        %1866 = vmatpush.bf16.msra.mxu0 %v1769
        %1867 = vmatpush.bf16.msra.mxu0 %v1763
        %1868 = vmatpush.bf16.msra.mxu0 %v1757
        %1869 = vmatpush.bf16.msra.mxu0 %v1751
        %1870 = vmatpush.bf16.msra.mxu0 %v1745
        %1871 = vmatpush.bf16.msra.mxu0 %v1739
        %1872 = vmatpush.bf16.msra.mxu0 %v1733
        %1873 = vmatmul.bf16.gmra.mxu0 %v1584
        %v1874 = vpop.f32.mrf.mxu0
        %v1875 = vadd.f32 0.0, %v1874
        %v1876 = vpop.f32.mrf.mxu0
        %1877 = vdwg.mxu0
        %1878 = vmatpush.bf16.msra.mxu0 %v1776
        %1879 = vmatpush.bf16.msra.mxu0 %v1770
        %1880 = vmatpush.bf16.msra.mxu0 %v1764
        %1881 = vmatpush.bf16.msra.mxu0 %v1758
        %1882 = vmatpush.bf16.msra.mxu0 %v1752
        %1883 = vmatpush.bf16.msra.mxu0 %v1746
        %1884 = vmatpush.bf16.msra.mxu0 %v1740
        %1885 = vmatpush.bf16.msra.mxu0 %v1734
        %1886 = vmatmul.bf16.gmra.mxu0 %v1584
        %v1887 = vpop.f32.mrf.mxu0
        %v1888 = vadd.f32 0.0, %v1887
        %v1889 = vpop.f32.mrf.mxu0
        %1890 = vdwg.mxu0
        %1891 = vmatpush.bf16.msra.mxu0 %v1777
        %1892 = vmatpush.bf16.msra.mxu0 %v1771
        %1893 = vmatpush.bf16.msra.mxu0 %v1765
        %1894 = vmatpush.bf16.msra.mxu0 %v1759
        %1895 = vmatpush.bf16.msra.mxu0 %v1753
        %1896 = vmatpush.bf16.msra.mxu0 %v1747
        %1897 = vmatpush.bf16.msra.mxu0 %v1741
        %1898 = vmatpush.bf16.msra.mxu0 %v1735
        %1899 = vmatmul.bf16.gmra.mxu0 %v1584
        %v1900 = vpop.f32.mrf.mxu0
        %v1901 = vadd.f32 0.0, %v1900
        %v1902 = vpop.f32.mrf.mxu0
        %1903 = vdwg.mxu0
        %v1904 = vadd.f32 %v980, %v1836
        %v1905 = vadd.f32 %v981, %v1849
        %v1906 = vadd.f32 %v982, %v1862
        %v1907 = vadd.f32 %v983, %v1875
        %v1908 = vadd.f32 %v984, %v1888
        %v1909 = vadd.f32 %v985, %v1901
        %1910 = vst [vmem:[#allocation2] sm:$0xff] %v1904
        %1911 = vst [vmem:[#allocation2 + $0x8] sm:$0xff] %v1905
        %1912 = vst [vmem:[#allocation2 + $0x10] sm:$0xff] %v1906
        %1913 = vst [vmem:[#allocation2 + $0x18] sm:$0xff] %v1907
        %1914 = vst [vmem:[#allocation2 + $0x20] sm:$0xff] %v1908
        %1915 = vst [vmem:[#allocation2 + $0x28] sm:$0xff] %v1909
        %p1916 = scmp.eq.s32.totalorder %s23, 1
        // Predicated region
        $region53: #{cola_forward.1} parent=39 // pred_check
          %p1917 = pneg %p1916
        $region54: #{cola_forward.1} parent=39 // pred_check_branch
          %1919 = sbr.rel (%p1917) target = $region56
        $region55: #{cola_forward.1} parent=39 // pred_region
          %v1920 = vld [vmem:[#allocation2] sm:$0xff]
          %v1921 = vld [vmem:[#allocation2 + $0x8] sm:$0xff]
          %v1922 = vld [vmem:[#allocation2 + $0x10] sm:$0xff]
          %v1923 = vld [vmem:[#allocation2 + $0x18] sm:$0xff]
          %v1924 = vld [vmem:[#allocation2 + $0x20] sm:$0xff]
          %v1925 = vld [vmem:[#allocation2 + $0x28] sm:$0xff]
          %v1926 = vld [vmem:[%s292] sm:$0xff]
          %1928 = vset.pattern.permute.xlu0 0
          %1929 = vperm.xlu0 %1928, %v1926
          %v1930 = vpop.permute.xlu0 %1929
          %v1932 = vmul.f32 %v1920, %v1930
          %v1933 = vmul.f32 %v1921, %v1930
          %v1934 = vmul.f32 %v1922, %v1930
          %v1935 = vmul.f32 %v1923, %v1930
          %v1936 = vmul.f32 %v1924, %v1930
          %v1937 = vmul.f32 %v1925, %v1930
          %v1938 = vld [vmem:[#allocation5] sm:$0xff]
          %v1939 = vld [vmem:[#allocation5 + $0x8] sm:$0xff]
          %v1940 = vld [vmem:[#allocation5 + $0x10] sm:$0xff]
          %v1941 = vld [vmem:[#allocation5 + $0x18] sm:$0xff]
          %v1942 = vld [vmem:[#allocation5 + $0x20] sm:$0xff]
          %v1943 = vld [vmem:[#allocation5 + $0x28] sm:$0xff]
          %v1944 = vld [vmem:[#allocation5 + $0x30] sm:$0xff]
          %v1945 = vld [vmem:[#allocation5 + $0x38] sm:$0xff]
          %v1946 = vld [vmem:[#allocation5 + $0x40] sm:$0xff]
          %v1947 = vld [vmem:[#allocation5 + $0x48] sm:$0xff]
          %v1948 = vld [vmem:[#allocation5 + $0x50] sm:$0xff]
          %v1949 = vld [vmem:[#allocation5 + $0x58] sm:$0xff]
          %v1950 = vld [vmem:[#allocation5 + $0x60] sm:$0xff]
          %v1951 = vld [vmem:[#allocation5 + $0x68] sm:$0xff]
          %v1952 = vld [vmem:[#allocation5 + $0x70] sm:$0xff]
          %v1953 = vld [vmem:[#allocation5 + $0x78] sm:$0xff]
          %v1954 = vld [vmem:[#allocation5 + $0x80] sm:$0xff]
          %v1955 = vld [vmem:[#allocation5 + $0x88] sm:$0xff]
          %v1956 = vld [vmem:[#allocation5 + $0x90] sm:$0xff]
          %v1957 = vld [vmem:[#allocation5 + $0x98] sm:$0xff]
          %v1958 = vld [vmem:[#allocation5 + $0xa0] sm:$0xff]
          %v1959 = vld [vmem:[#allocation5 + $0xa8] sm:$0xff]
          %v1960 = vld [vmem:[#allocation5 + $0xb0] sm:$0xff]
          %v1961 = vld [vmem:[#allocation5 + $0xb8] sm:$0xff]
          %v1962 = vld [vmem:[#allocation5 + $0xc0] sm:$0xff]
          %v1963 = vld [vmem:[#allocation5 + $0xc8] sm:$0xff]
          %v1964 = vld [vmem:[#allocation5 + $0xd0] sm:$0xff]
          %v1965 = vld [vmem:[#allocation5 + $0xd8] sm:$0xff]
          %v1966 = vld [vmem:[#allocation5 + $0xe0] sm:$0xff]
          %v1967 = vld [vmem:[#allocation5 + $0xe8] sm:$0xff]
          %v1968 = vld [vmem:[#allocation5 + $0xf0] sm:$0xff]
          %v1969 = vld [vmem:[#allocation5 + $0xf8] sm:$0xff]
          %v1970 = vld [vmem:[#allocation5 + $0x100] sm:$0xff]
          %v1971 = vld [vmem:[#allocation5 + $0x108] sm:$0xff]
          %v1972 = vld [vmem:[#allocation5 + $0x110] sm:$0xff]
          %v1973 = vld [vmem:[#allocation5 + $0x118] sm:$0xff]
          %v1974 = vld [vmem:[#allocation5 + $0x120] sm:$0xff]
          %v1975 = vld [vmem:[#allocation5 + $0x128] sm:$0xff]
          %v1976 = vld [vmem:[#allocation5 + $0x130] sm:$0xff]
          %v1977 = vld [vmem:[#allocation5 + $0x138] sm:$0xff]
          %v1978 = vld [vmem:[#allocation5 + $0x140] sm:$0xff]
          %v1979 = vld [vmem:[#allocation5 + $0x148] sm:$0xff]
          %v1980 = vld [vmem:[#allocation5 + $0x150] sm:$0xff]
          %v1981 = vld [vmem:[#allocation5 + $0x158] sm:$0xff]
          %v1982 = vld [vmem:[#allocation5 + $0x160] sm:$0xff]
          %v1983 = vld [vmem:[#allocation5 + $0x168] sm:$0xff]
          %v1984 = vld [vmem:[#allocation5 + $0x170] sm:$0xff]
          %v1985 = vld [vmem:[#allocation5 + $0x178] sm:$0xff]
          %v1986 = vld [vmem:[#allocation5 + $0x180] sm:$0xff]
          %v1987 = vld [vmem:[#allocation5 + $0x188] sm:$0xff]
          %v1988 = vld [vmem:[#allocation5 + $0x190] sm:$0xff]
          %v1989 = vld [vmem:[#allocation5 + $0x198] sm:$0xff]
          %v1990 = vld [vmem:[#allocation5 + $0x1a0] sm:$0xff]
          %v1991 = vld [vmem:[#allocation5 + $0x1a8] sm:$0xff]
          %v1992 = vld [vmem:[#allocation5 + $0x1b0] sm:$0xff]
          %v1993 = vld [vmem:[#allocation5 + $0x1b8] sm:$0xff]
          %v1994 = vld [vmem:[#allocation5 + $0x1c0] sm:$0xff]
          %v1995 = vld [vmem:[#allocation5 + $0x1c8] sm:$0xff]
          %v1996 = vld [vmem:[#allocation5 + $0x1d0] sm:$0xff]
          %v1997 = vld [vmem:[#allocation5 + $0x1d8] sm:$0xff]
          %v1998 = vld [vmem:[#allocation5 + $0x1e0] sm:$0xff]
          %v1999 = vld [vmem:[#allocation5 + $0x1e8] sm:$0xff]
          %v2000 = vld [vmem:[#allocation5 + $0x1f0] sm:$0xff]
          %v2001 = vld [vmem:[#allocation5 + $0x1f8] sm:$0xff]
          %v2002 = vld [vmem:[#allocation5 + $0x200] sm:$0xff]
          %v2003 = vld [vmem:[#allocation5 + $0x208] sm:$0xff]
          %v2004 = vld [vmem:[#allocation5 + $0x210] sm:$0xff]
          %v2005 = vld [vmem:[#allocation5 + $0x218] sm:$0xff]
          %v2006 = vld [vmem:[#allocation5 + $0x220] sm:$0xff]
          %v2007 = vld [vmem:[#allocation5 + $0x228] sm:$0xff]
          %v2008 = vld [vmem:[#allocation5 + $0x230] sm:$0xff]
          %v2009 = vld [vmem:[#allocation5 + $0x238] sm:$0xff]
          %v2010 = vld [vmem:[#allocation5 + $0x240] sm:$0xff]
          %v2011 = vld [vmem:[#allocation5 + $0x248] sm:$0xff]
          %v2012 = vld [vmem:[#allocation5 + $0x250] sm:$0xff]
          %v2013 = vld [vmem:[#allocation5 + $0x258] sm:$0xff]
          %v2014 = vld [vmem:[#allocation5 + $0x260] sm:$0xff]
          %v2015 = vld [vmem:[#allocation5 + $0x268] sm:$0xff]
          %v2016 = vld [vmem:[#allocation5 + $0x270] sm:$0xff]
          %v2017 = vld [vmem:[#allocation5 + $0x278] sm:$0xff]
          %v2018 = vld [vmem:[#allocation5 + $0x280] sm:$0xff]
          %v2019 = vld [vmem:[#allocation5 + $0x288] sm:$0xff]
          %v2020 = vld [vmem:[#allocation5 + $0x290] sm:$0xff]
          %v2021 = vld [vmem:[#allocation5 + $0x298] sm:$0xff]
          %v2022 = vld [vmem:[#allocation5 + $0x2a0] sm:$0xff]
          %v2023 = vld [vmem:[#allocation5 + $0x2a8] sm:$0xff]
          %v2024 = vld [vmem:[#allocation5 + $0x2b0] sm:$0xff]
          %v2025 = vld [vmem:[#allocation5 + $0x2b8] sm:$0xff]
          %v2026 = vld [vmem:[#allocation5 + $0x2c0] sm:$0xff]
          %v2027 = vld [vmem:[#allocation5 + $0x2c8] sm:$0xff]
          %v2028 = vld [vmem:[#allocation5 + $0x2d0] sm:$0xff]
          %v2029 = vld [vmem:[#allocation5 + $0x2d8] sm:$0xff]
          %v2030 = vld [vmem:[#allocation5 + $0x2e0] sm:$0xff]
          %v2031 = vld [vmem:[#allocation5 + $0x2e8] sm:$0xff]
          %v2032 = vld [vmem:[#allocation5 + $0x2f0] sm:$0xff]
          %v2033 = vld [vmem:[#allocation5 + $0x2f8] sm:$0xff]
          %v2034 = vld [vmem:[%s4] sm:$0x1]
          %v2036 = vperm.slane %v2034, 0
          %2038 = vmatpush.msra.mxu0 %v1953
          %2039 = vmatpush.msra.mxu0 %v1952
          %2040 = vmatpush.msra.mxu0 %v1951
          %2041 = vmatpush.msra.mxu0 %v1950
          %2042 = vmatpush.msra.mxu0 %v1949
          %2043 = vmatpush.msra.mxu0 %v1948
          %2044 = vmatpush.msra.mxu0 %v1947
          %2045 = vmatpush.msra.mxu0 %v1946
          %2046 = vmatpush.msra.mxu0 %v1945
          %2047 = vmatpush.msra.mxu0 %v1944
          %2048 = vmatpush.msra.mxu0 %v1943
          %2049 = vmatpush.msra.mxu0 %v1942
          %2050 = vmatpush.msra.mxu0 %v1941
          %2051 = vmatpush.msra.mxu0 %v1940
          %2052 = vmatpush.msra.mxu0 %v1939
          %2053 = vmatpush.msra.mxu0 %v1938
          %2054 = vmatmul.f32.gmra.mxu0 %v1932
          %v2055 = vpop.f32.mrf.mxu0
          %v2056 = vadd.f32 %v2036, %v2055
          %2057 = vdwg.mxu0
          %2058 = vmatpush.msra.mxu0 %v1969
          %2059 = vmatpush.msra.mxu0 %v1968
          %2060 = vmatpush.msra.mxu0 %v1967
          %2061 = vmatpush.msra.mxu0 %v1966
          %2062 = vmatpush.msra.mxu0 %v1965
          %2063 = vmatpush.msra.mxu0 %v1964
          %2064 = vmatpush.msra.mxu0 %v1963
          %2065 = vmatpush.msra.mxu0 %v1962
          %2066 = vmatpush.msra.mxu0 %v1961
          %2067 = vmatpush.msra.mxu0 %v1960
          %2068 = vmatpush.msra.mxu0 %v1959
          %2069 = vmatpush.msra.mxu0 %v1958
          %2070 = vmatpush.msra.mxu0 %v1957
          %2071 = vmatpush.msra.mxu0 %v1956
          %2072 = vmatpush.msra.mxu0 %v1955
          %2073 = vmatpush.msra.mxu0 %v1954
          %2074 = vmatmul.f32.gmra.mxu0 %v1933
          %v2075 = vpop.f32.mrf.mxu0
          %v2076 = vadd.f32 %v2056, %v2075
          %2077 = vdwg.mxu0
          %2078 = vmatpush.msra.mxu0 %v1985
          %2079 = vmatpush.msra.mxu0 %v1984
          %2080 = vmatpush.msra.mxu0 %v1983
          %2081 = vmatpush.msra.mxu0 %v1982
          %2082 = vmatpush.msra.mxu0 %v1981
          %2083 = vmatpush.msra.mxu0 %v1980
          %2084 = vmatpush.msra.mxu0 %v1979
          %2085 = vmatpush.msra.mxu0 %v1978
          %2086 = vmatpush.msra.mxu0 %v1977
          %2087 = vmatpush.msra.mxu0 %v1976
          %2088 = vmatpush.msra.mxu0 %v1975
          %2089 = vmatpush.msra.mxu0 %v1974
          %2090 = vmatpush.msra.mxu0 %v1973
          %2091 = vmatpush.msra.mxu0 %v1972
          %2092 = vmatpush.msra.mxu0 %v1971
          %2093 = vmatpush.msra.mxu0 %v1970
          %2094 = vmatmul.f32.gmra.mxu0 %v1934
          %v2095 = vpop.f32.mrf.mxu0
          %v2096 = vadd.f32 %v2076, %v2095
          %2097 = vdwg.mxu0
          %2098 = vmatpush.msra.mxu0 %v2001
          %2099 = vmatpush.msra.mxu0 %v2000
          %2100 = vmatpush.msra.mxu0 %v1999
          %2101 = vmatpush.msra.mxu0 %v1998
          %2102 = vmatpush.msra.mxu0 %v1997
          %2103 = vmatpush.msra.mxu0 %v1996
          %2104 = vmatpush.msra.mxu0 %v1995
          %2105 = vmatpush.msra.mxu0 %v1994
          %2106 = vmatpush.msra.mxu0 %v1993
          %2107 = vmatpush.msra.mxu0 %v1992
          %2108 = vmatpush.msra.mxu0 %v1991
          %2109 = vmatpush.msra.mxu0 %v1990
          %2110 = vmatpush.msra.mxu0 %v1989
          %2111 = vmatpush.msra.mxu0 %v1988
          %2112 = vmatpush.msra.mxu0 %v1987
          %2113 = vmatpush.msra.mxu0 %v1986
          %2114 = vmatmul.f32.gmra.mxu0 %v1935
          %v2115 = vpop.f32.mrf.mxu0
          %v2116 = vadd.f32 %v2096, %v2115
          %2117 = vdwg.mxu0
          %2118 = vmatpush.msra.mxu0 %v2017
          %2119 = vmatpush.msra.mxu0 %v2016
          %2120 = vmatpush.msra.mxu0 %v2015
          %2121 = vmatpush.msra.mxu0 %v2014
          %2122 = vmatpush.msra.mxu0 %v2013
          %2123 = vmatpush.msra.mxu0 %v2012
          %2124 = vmatpush.msra.mxu0 %v2011
          %2125 = vmatpush.msra.mxu0 %v2010
          %2126 = vmatpush.msra.mxu0 %v2009
          %2127 = vmatpush.msra.mxu0 %v2008
          %2128 = vmatpush.msra.mxu0 %v2007
          %2129 = vmatpush.msra.mxu0 %v2006
          %2130 = vmatpush.msra.mxu0 %v2005
          %2131 = vmatpush.msra.mxu0 %v2004
          %2132 = vmatpush.msra.mxu0 %v2003
          %2133 = vmatpush.msra.mxu0 %v2002
          %2134 = vmatmul.f32.gmra.mxu0 %v1936
          %v2135 = vpop.f32.mrf.mxu0
          %v2136 = vadd.f32 %v2116, %v2135
          %2137 = vdwg.mxu0
          %2138 = vmatpush.msra.mxu0 %v2033
          %2139 = vmatpush.msra.mxu0 %v2032
          %2140 = vmatpush.msra.mxu0 %v2031
          %2141 = vmatpush.msra.mxu0 %v2030
          %2142 = vmatpush.msra.mxu0 %v2029
          %2143 = vmatpush.msra.mxu0 %v2028
          %2144 = vmatpush.msra.mxu0 %v2027
          %2145 = vmatpush.msra.mxu0 %v2026
          %2146 = vmatpush.msra.mxu0 %v2025
          %2147 = vmatpush.msra.mxu0 %v2024
          %2148 = vmatpush.msra.mxu0 %v2023
          %2149 = vmatpush.msra.mxu0 %v2022
          %2150 = vmatpush.msra.mxu0 %v2021
          %2151 = vmatpush.msra.mxu0 %v2020
          %2152 = vmatpush.msra.mxu0 %v2019
          %2153 = vmatpush.msra.mxu0 %v2018
          %2154 = vmatmul.f32.gmra.mxu0 %v1937
          %v2155 = vpop.f32.mrf.mxu0
          %v2156 = vadd.f32 %v2136, %v2155
          %2157 = vdwg.mxu0
          %2158 = vst [vmem:[%s296] sm:$0xff] %v2156
        $region56: #{cola_forward.1} parent=39 // pred_fallthru
          _
        %p2159 = scmp.lt.s32.totalorder %s22, 1
        %s2160 = scalar_select %p2159, %s22, 1
        %s2161 = smul.addr %s2160, 8
        %s2162 = scalar_lea.vmem %s5, %s2161
        // Predicated region
        $region57: #{cola_forward.1} parent=39 // pred_check
          %p2163 = pneg %p165
        $region58: #{cola_forward.1} parent=39 // pred_check_branch
          %2165 = sbr.rel (%p2163) target = $region60
        $region59: #{cola_forward.1} parent=39 // pred_region
          _
        $region60: #{cola_forward.1} parent=39 // pred_fallthru
          _
      $region40: #{cola_forward.1} parent=5 // pred_fallthru
        _
      %p2166 = scmp.le.s32.totalorder 2, %s13
      // Predicated region
      $region61: #{cola_forward.1} parent=5 // pred_check
        %p2167 = pneg %p2166
      $region62: #{cola_forward.1} parent=5 // pred_check_branch
        %2169 = sbr.rel (%p2167) target = $region64
      $region63: #{cola_forward.1} parent=5 // pred_region
        %s2170 = ssub.s32 %s13, 2
        // Predicated region
        $region65: #{cola_forward.1} parent=63 // pred_check
          %p2171 = pneg %p171
        $region66: #{cola_forward.1} parent=63 // pred_check_branch
          %2173 = sbr.rel (%p2171) target = $region68
        $region67: #{cola_forward.1} parent=63 // pred_region
          %p2174 = scmp.lt.s32.totalorder %s24, 1
          %s2175 = scalar_select %p2174, %s24, 1
          %s2176 = smul.addr %s2175, 8
          %s2177 = scalar_lea.vmem %s5, %s2176
        $region68: #{cola_forward.1} parent=63 // pred_fallthru
          _
      $region64: #{cola_forward.1} parent=5 // pred_fallthru
        _
    $region6: #{cola_forward.1} parent=1 // loop_footer
      %s17 = sadd.s32 1, %s13
    $region7: #{cola_forward.1} parent=1 // loop_footer_branch
      %12 = sbr.rel target = $region3
    $region8: #{cola_forward.1} parent=1 // loop_exit
      _
    %2178 = vsyncpa [#allocation4], 1
    %s2179 = scalar_lea.sflag [#allocation4], 1
    %2180 = vsyncpa %s2179, 1
    %2181 = vsyncpa [#allocation6], 1

</llo_original>
